<compile_context>
chip_gen: v7x
topology: tpu7x:2x2x1
jax: 0.10.0
libtpu: 0.0.40
codegen_flags: <defaults>
</compile_context>

<pallas_src>
import functools

import jax
import jax.numpy as jnp
from jax.experimental import pallas as pl
from jax.experimental.pallas import tpu as pltpu


def _relation_kernel(x_ref, mj_ref, mi_ref, w0t_ref, b0_ref, w1t_ref, b1_ref,
                     o_ref, fg0_ref, fg1_ref, xm_ref, acc_ref,
                     *, tj, gate_dtype):
    bt, s, e = x_ref.shape
    x = x_ref[...]                                        # (BT, S, E) f32

    # ---- forget-gate linears: fold batch into the MXU (M = BT*S) -----------
    x2 = x.reshape(bt * s, e).astype(gate_dtype)
    w0t = w0t_ref[...].astype(gate_dtype)
    w1t = w1t_ref[...].astype(gate_dtype)
    fg0 = jnp.dot(x2, w0t, preferred_element_type=jnp.float32) + b0_ref[...]
    fg1 = jnp.dot(x2, w1t, preferred_element_type=jnp.float32) + b1_ref[...]

    fg0_ref[...] = fg0.reshape(bt, s, e).astype(gate_dtype)
    fg1_ref[...] = fg1.reshape(bt, s, e).astype(gate_dtype)
    xm_ref[...] = (x * mj_ref[...]).astype(gate_dtype)    # mask_j folded into x_j
    acc_ref[...] = jnp.zeros_like(acc_ref)

    # ---- pairwise gate stage: j-tiled running accumulation ------------------
    # ctx[b,i,:] += sigmoid(fg0[b,i,:] + fg1[b,j,:]) * xm[b,j,:]
    @pl.loop(0, s // tj)
    def _(jt):
        j0 = pl.multiple_of(jt * tj, tj)
        fg1_t = fg1_ref[:, pl.ds(j0, tj), :]              # (BT, TJ, E)
        xm_t = xm_ref[:, pl.ds(j0, tj), :]                # (BT, TJ, E)
        fg0v = fg0_ref[...]                               # (BT, S, E)
        acc = acc_ref[...]                                # (BT, S, E) f32
        for r in range(tj):                               # unrolled over the tile
            gate = jax.nn.sigmoid(fg0v + fg1_t[:, r:r + 1, :])
            acc = acc + (gate * xm_t[:, r:r + 1, :]).astype(jnp.float32)
        acc_ref[...] = acc

    # ---- finalize: mask_i / len (reciprocal precomputed outside) + tanh -----
    o_ref[...] = jnp.tanh(acc_ref[...] * mi_ref[...])


def _choose_bt(B, S):
    """Batch-block size: fold batches toward ~256 MXU rows, keep >=2 grid blocks."""
    cap = max(1, 256 // max(S, 1))
    divisors = [d for d in range(1, B + 1) if B % d == 0 and d <= cap]
    multi = [d for d in divisors if B // d >= 2]
    if multi:
        return max(multi)
    return max(divisors) if divisors else 1


def _choose_tj(S, gate_dtype):
    """j-tile rows: match sublane tiling (8 f32 / 16 bf16) when S allows."""
    prefs = (16, 8, 4, 2, 1) if jnp.dtype(gate_dtype) == jnp.dtype(jnp.bfloat16) \
        else (8, 4, 2, 1)
    for tj in prefs:
        if S % tj == 0:
            return tj
    return 1


def _build_call(B, S, E, bt, tj, gate_dtype, single_buffer_weights):
    kernel = functools.partial(_relation_kernel, tj=tj, gate_dtype=gate_dtype)

    gate_bytes = jnp.dtype(gate_dtype).itemsize
    blk = bt * S * E
    est = (4 * blk * 4                     # x + out blocks, double-buffered
           + 8 * bt * S * 4                # mask blocks
           + 2 * (E * E + E) * 4 * 2       # weights/biases (worst case 2-buf)
           + blk * 4                       # ctx accumulator scratch
           + 3 * blk * gate_bytes)         # fg0 / fg1 / xm scratch
    vmem_limit = int(min(48 * 2 ** 20, max(8 * 2 ** 20, 2 * est)))

    wkw = {"pipeline_mode": pl.Buffered(1)} if single_buffer_weights else {}

    return pl.pallas_call(
        kernel,
        out_shape=jax.ShapeDtypeStruct((B, S, E), jnp.float32),
        grid_spec=pltpu.PrefetchScalarGridSpec(
            num_scalar_prefetch=0,
            grid=(B // bt,),
            in_specs=[
                pl.BlockSpec((bt, S, E), lambda b: (b, 0, 0)),      # x
                pl.BlockSpec((bt, S, 1), lambda b: (b, 0, 0)),      # mask_j
                pl.BlockSpec((bt, S, 1), lambda b: (b, 0, 0)),      # mask_i / len
                pl.BlockSpec((E, E), lambda b: (0, 0), **wkw),      # W0^T
                pl.BlockSpec((1, E), lambda b: (0, 0), **wkw),      # b0
                pl.BlockSpec((E, E), lambda b: (0, 0), **wkw),      # W1^T
                pl.BlockSpec((1, E), lambda b: (0, 0), **wkw),      # b1
            ],
            out_specs=pl.BlockSpec((bt, S, E), lambda b: (b, 0, 0)),
            scratch_shapes=[
                pltpu.VMEM((bt, S, E), gate_dtype),    # fg0
                pltpu.VMEM((bt, S, E), gate_dtype),    # fg1
                pltpu.VMEM((bt, S, E), gate_dtype),    # x * mask_j
                pltpu.VMEM((bt, S, E), jnp.float32),   # ctx accumulator
            ],
        ),
        compiler_params=pltpu.CompilerParams(
            dimension_semantics=("parallel",),
            vmem_limit_bytes=vmem_limit,
        ),
    )


def relation_layer(x, masks, w0, b0, w1, b1, *, gate_dtype=jnp.float32):
    """x: (B, S, E) f32; masks: (B, S); w*: (E, E) torch-Linear layout; b*: (E,)."""
    B, S, E = x.shape
    x = x.astype(jnp.float32)
    m = masks.astype(jnp.float32)

    lengths = jnp.sum(m, axis=1, keepdims=True)            # (B, 1)
    inv_len = 1.0 / jnp.maximum(lengths, 1.0)               # guard empty rows
    mj = m.reshape(B, S, 1)                                  # mask_j
    mi = (m * inv_len).reshape(B, S, 1)                      # mask_i / len

    w0t = jnp.asarray(w0, jnp.float32).T
    w1t = jnp.asarray(w1, jnp.float32).T
    b0r = jnp.asarray(b0, jnp.float32).reshape(1, E)
    b1r = jnp.asarray(b1, jnp.float32).reshape(1, E)

    bt = _choose_bt(B, S)
    tj = _choose_tj(S, gate_dtype)
    args = (x, mj, mi, w0t, b0r, w1t, b1r)
    try:
        return _build_call(B, S, E, bt, tj, gate_dtype, True)(*args)
    except Exception:
        # Fall back to default (double) buffering of the weight blocks.
        return _build_call(B, S, E, bt, tj, gate_dtype, False)(*args)


def relation_layer_reference(x, masks, w0, b0, w1, b1):
    """Pure-JAX mirror of the PyTorch forward (for correctness check)."""
    B, S, E = x.shape
    m = masks.astype(jnp.float32)
    lengths = jnp.sum(m, axis=1)                                    # (B,)
    fg0 = x @ w0.T + b0                                             # (B, S, E)
    fg1 = x @ w1.T + b1                                             # (B, S, E)
    gate = jax.nn.sigmoid(fg0[:, :, None, :] + fg1[:, None, :, :])  # (B, S, S, E)
    sel = m[:, :, None] * m[:, None, :]                             # (B, S, S)
    fr = x[:, None, :, :] * gate * sel[..., None]                   # (B, S, S, E)
    ctx = jnp.sum(fr, axis=2) / lengths[:, None, None]              # (B, S, E)
    return jnp.tanh(ctx)


if __name__ == "__main__":
    B, S, E = 4, 8, 128   # feature_dim = E (must match embed dim)

    key = jax.random.PRNGKey(0)
    kx, kw0, kb0, kw1, kb1 = jax.random.split(key, 5)

    x = jax.random.normal(kx, (B, S, E), dtype=jnp.float32)
    # masks: varied sentence lengths (all >= 1)
    masks = jnp.array(
        [[1] * 8,
         [1] * 5 + [0] * 3,
         [1] * 7 + [0] * 1,
         [1] * 3 + [0] * 5], dtype=jnp.float32)

    bound = 1.0 / jnp.sqrt(E)
    w0 = jax.random.uniform(kw0, (E, E), jnp.float32, -bound, bound)
    b0 = jax.random.uniform(kb0, (E,), jnp.float32, -bound, bound)
    w1 = jax.random.uniform(kw1, (E, E), jnp.float32, -bound, bound)
    b1 = jax.random.uniform(kb1, (E,), jnp.float32, -bound, bound)

    ref = relation_layer_reference(x, masks, w0, b0, w1, b1)

    # f32 path (default; required on v5e, and for tight tolerance)
    out = relation_layer(x, masks, w0, b0, w1, b1)
    out = jax.block_until_ready(out)
    assert out.shape == (B, S, E)
    assert jnp.allclose(out, ref, atol=1e-5, rtol=1e-5), (
        float(jnp.max(jnp.abs(out - ref))))

    # bf16 gate/MXU path (v6e/v7x throughput option) — looser tolerance
    out_bf16 = relation_layer(x, masks, w0, b0, w1, b1, gate_dtype=jnp.bfloat16)
    out_bf16 = jax.block_until_ready(out_bf16)
    assert jnp.allclose(out_bf16, ref, atol=5e-2, rtol=5e-2), (
        float(jnp.max(jnp.abs(out_bf16 - ref))))

    print("KERNEL_OK")
</pallas_src>

<mosaic_0001>
module attributes {stable_mosaic.version = 11 : i64} {
  func.func @_relation_kernel(%arg0: i32, %arg1: memref<2x8x128xf32, #tpu.memory_space<vmem>>, %arg2: memref<2x8x1xf32, #tpu.memory_space<vmem>>, %arg3: memref<2x8x1xf32, #tpu.memory_space<vmem>>, %arg4: memref<128x128xf32, #tpu.memory_space<vmem>>, %arg5: memref<1x128xf32, #tpu.memory_space<vmem>>, %arg6: memref<128x128xf32, #tpu.memory_space<vmem>>, %arg7: memref<1x128xf32, #tpu.memory_space<vmem>>, %arg8: memref<2x8x128xf32, #tpu.memory_space<vmem>>, %arg9: memref<2x8x128xf32, #tpu.memory_space<vmem>>, %arg10: memref<2x8x128xf32, #tpu.memory_space<vmem>>, %arg11: memref<2x8x128xf32, #tpu.memory_space<vmem>>, %arg12: memref<2x8x128xf32, #tpu.memory_space<vmem>>) attributes {dimension_semantics = [#tpu.dimension_semantics<parallel>], iteration_bounds = array<i64: 2>, scalar_prefetch = 0 : i64, scratch_operands = 4 : i64, tpu.core_type = #tpu.core_type<tc>, window_params = [{transform_indices = @transform_0, window_bounds = array<i64: 2, 8, 128>}, {transform_indices = @transform_1, window_bounds = array<i64: 2, 8, 1>}, {transform_indices = @transform_2, window_bounds = array<i64: 2, 8, 1>}, {pipeline_mode = #tpu.pipeline_mode<synchronous>, transform_indices = @transform_3, window_bounds = array<i64: 128, 128>}, {pipeline_mode = #tpu.pipeline_mode<synchronous>, transform_indices = @transform_4, window_bounds = array<i64: 1, 128>}, {pipeline_mode = #tpu.pipeline_mode<synchronous>, transform_indices = @transform_5, window_bounds = array<i64: 128, 128>}, {pipeline_mode = #tpu.pipeline_mode<synchronous>, transform_indices = @transform_6, window_bounds = array<i64: 1, 128>}, {transform_indices = @transform_7, window_bounds = array<i64: 2, 8, 128>}]} {
    %c0 = arith.constant 0 : index
    %c0_0 = arith.constant 0 : index
    %c0_1 = arith.constant 0 : index
    %0 = vector.load %arg1[%c0, %c0_0, %c0_1] : memref<2x8x128xf32, #tpu.memory_space<vmem>>, vector<2x8x128xf32>
    %1 = vector.shape_cast %0 : vector<2x8x128xf32> to vector<16x128xf32>
    %c0_2 = arith.constant 0 : index
    %c0_3 = arith.constant 0 : index
    %2 = vector.load %arg4[%c0_2, %c0_3] : memref<128x128xf32, #tpu.memory_space<vmem>>, vector<128x128xf32>
    %c0_4 = arith.constant 0 : index
    %c0_5 = arith.constant 0 : index
    %3 = vector.load %arg6[%c0_4, %c0_5] : memref<128x128xf32, #tpu.memory_space<vmem>>, vector<128x128xf32>
    %cst = arith.constant dense<0.000000e+00> : vector<16x128xf32>
    %4 = tpu.matmul %1, %2, %cst {dimension_numbers = #tpu.dot_dimension_numbers<[1], [0], [0], [1], [0, 0, 1, 1], [], []>} : vector<16x128xf32>, vector<128x128xf32>, vector<16x128xf32> -> vector<16x128xf32>
    %c0_6 = arith.constant 0 : index
    %c0_7 = arith.constant 0 : index
    %5 = vector.load %arg5[%c0_6, %c0_7] : memref<1x128xf32, #tpu.memory_space<vmem>>, vector<1x128xf32>
    %6 = vector.broadcast %5 : vector<1x128xf32> to vector<16x128xf32>
    %7 = arith.addf %4, %6 : vector<16x128xf32>
    %cst_8 = arith.constant dense<0.000000e+00> : vector<16x128xf32>
    %8 = tpu.matmul %1, %3, %cst_8 {dimension_numbers = #tpu.dot_dimension_numbers<[1], [0], [0], [1], [0, 0, 1, 1], [], []>} : vector<16x128xf32>, vector<128x128xf32>, vector<16x128xf32> -> vector<16x128xf32>
    %c0_9 = arith.constant 0 : index
    %c0_10 = arith.constant 0 : index
    %9 = vector.load %arg7[%c0_9, %c0_10] : memref<1x128xf32, #tpu.memory_space<vmem>>, vector<1x128xf32>
    %10 = vector.broadcast %9 : vector<1x128xf32> to vector<16x128xf32>
    %11 = arith.addf %8, %10 : vector<16x128xf32>
    %12 = vector.shape_cast %7 : vector<16x128xf32> to vector<2x8x128xf32>
    %c0_11 = arith.constant 0 : index
    %c0_12 = arith.constant 0 : index
    %c0_13 = arith.constant 0 : index
    %13 = vector.load %arg9[%c0_11, %c0_12, %c0_13] : memref<2x8x128xf32, #tpu.memory_space<vmem>>, vector<2x8x128xf32>
    tpu.vector_store %arg9[%c0_11, %c0_12, %c0_13], %12 {strides = array<i32>} : memref<2x8x128xf32, #tpu.memory_space<vmem>>, vector<2x8x128xf32>,
    %14 = vector.shape_cast %11 : vector<16x128xf32> to vector<2x8x128xf32>
    %c0_14 = arith.constant 0 : index
    %c0_15 = arith.constant 0 : index
    %c0_16 = arith.constant 0 : index
    %15 = vector.load %arg10[%c0_14, %c0_15, %c0_16] : memref<2x8x128xf32, #tpu.memory_space<vmem>>, vector<2x8x128xf32>
    tpu.vector_store %arg10[%c0_14, %c0_15, %c0_16], %14 {strides = array<i32>} : memref<2x8x128xf32, #tpu.memory_space<vmem>>, vector<2x8x128xf32>,
    %c0_17 = arith.constant 0 : index
    %c0_18 = arith.constant 0 : index
    %c0_19 = arith.constant 0 : index
    %16 = vector.load %arg2[%c0_17, %c0_18, %c0_19] : memref<2x8x1xf32, #tpu.memory_space<vmem>>, vector<2x8x1xf32>
    %17 = vector.broadcast %16 : vector<2x8x1xf32> to vector<2x8x128xf32>
    %18 = arith.mulf %0, %17 : vector<2x8x128xf32>
    %c0_20 = arith.constant 0 : index
    %c0_21 = arith.constant 0 : index
    %c0_22 = arith.constant 0 : index
    %19 = vector.load %arg11[%c0_20, %c0_21, %c0_22] : memref<2x8x128xf32, #tpu.memory_space<vmem>>, vector<2x8x128xf32>
    tpu.vector_store %arg11[%c0_20, %c0_21, %c0_22], %18 {strides = array<i32>} : memref<2x8x128xf32, #tpu.memory_space<vmem>>, vector<2x8x128xf32>,
    %cst_23 = arith.constant 0.000000e+00 : f32
    %20 = vector.broadcast %cst_23 : f32 to vector<2x8x128xf32>
    %c0_24 = arith.constant 0 : index
    %c0_25 = arith.constant 0 : index
    %c0_26 = arith.constant 0 : index
    %21 = vector.load %arg12[%c0_24, %c0_25, %c0_26] : memref<2x8x128xf32, #tpu.memory_space<vmem>>, vector<2x8x128xf32>
    tpu.vector_store %arg12[%c0_24, %c0_25, %c0_26], %20 {strides = array<i32>} : memref<2x8x128xf32, #tpu.memory_space<vmem>>, vector<2x8x128xf32>,
    %c0_i32 = arith.constant 0 : i32
    %c1_i32 = arith.constant 1 : i32
    %22 = arith.muli %c0_i32, %c1_i32 : i32
    %c0_i32_27 = arith.constant 0 : i32
    %23 = arith.addi %c0_i32_27, %22 : i32
    %c8_i32 = arith.constant 8 : i32
    %24 = arith.muli %23, %c8_i32 : i32
    %25 = tpu.assume_multiple %24, 8 : i32
    %c0_28 = arith.constant 0 : index
    %26 = arith.index_cast %25 : i32 to index
    %c0_29 = arith.constant 0 : index
    %27 = vector.load %arg10[%c0_28, %26, %c0_29] : memref<2x8x128xf32, #tpu.memory_space<vmem>>, vector<2x8x128xf32>
    %c0_30 = arith.constant 0 : index
    %28 = arith.index_cast %25 : i32 to index
    %c0_31 = arith.constant 0 : index
    %29 = vector.load %arg11[%c0_30, %28, %c0_31] : memref<2x8x128xf32, #tpu.memory_space<vmem>>, vector<2x8x128xf32>
    %c0_32 = arith.constant 0 : index
    %c0_33 = arith.constant 0 : index
    %c0_34 = arith.constant 0 : index
    %30 = vector.load %arg9[%c0_32, %c0_33, %c0_34] : memref<2x8x128xf32, #tpu.memory_space<vmem>>, vector<2x8x128xf32>
    %c0_35 = arith.constant 0 : index
    %c0_36 = arith.constant 0 : index
    %c0_37 = arith.constant 0 : index
    %31 = vector.load %arg12[%c0_35, %c0_36, %c0_37] : memref<2x8x128xf32, #tpu.memory_space<vmem>>, vector<2x8x128xf32>
    %32 = vector.extract_strided_slice %27 {offsets = [0, 0, 0], sizes = [2, 1, 128], strides = [1, 1, 1]} : vector<2x8x128xf32> to vector<2x1x128xf32>
    %33 = vector.broadcast %32 : vector<2x1x128xf32> to vector<2x8x128xf32>
    %34 = arith.addf %30, %33 : vector<2x8x128xf32>
    %35 = arith.negf %34 : vector<2x8x128xf32>
    %36 = math.exp %35 : vector<2x8x128xf32>
    %cst_38 = arith.constant 1.000000e+00 : f32
    %37 = vector.broadcast %cst_38 : f32 to vector<2x8x128xf32>
    %38 = arith.addf %37, %36 : vector<2x8x128xf32>
    %39 = arith.divf %37, %38 : vector<2x8x128xf32>
    %40 = vector.extract_strided_slice %29 {offsets = [0, 0, 0], sizes = [2, 1, 128], strides = [1, 1, 1]} : vector<2x8x128xf32> to vector<2x1x128xf32>
    %41 = vector.broadcast %40 : vector<2x1x128xf32> to vector<2x8x128xf32>
    %42 = arith.mulf %39, %41 : vector<2x8x128xf32>
    %43 = arith.addf %31, %42 : vector<2x8x128xf32>
    %44 = vector.extract_strided_slice %27 {offsets = [0, 1, 0], sizes = [2, 1, 128], strides = [1, 1, 1]} : vector<2x8x128xf32> to vector<2x1x128xf32>
    %45 = vector.broadcast %44 : vector<2x1x128xf32> to vector<2x8x128xf32>
    %46 = arith.addf %30, %45 : vector<2x8x128xf32>
    %47 = arith.negf %46 : vector<2x8x128xf32>
    %48 = math.exp %47 : vector<2x8x128xf32>
    %cst_39 = arith.constant 1.000000e+00 : f32
    %49 = vector.broadcast %cst_39 : f32 to vector<2x8x128xf32>
    %50 = arith.addf %49, %48 : vector<2x8x128xf32>
    %51 = arith.divf %49, %50 : vector<2x8x128xf32>
    %52 = vector.extract_strided_slice %29 {offsets = [0, 1, 0], sizes = [2, 1, 128], strides = [1, 1, 1]} : vector<2x8x128xf32> to vector<2x1x128xf32>
    %53 = vector.broadcast %52 : vector<2x1x128xf32> to vector<2x8x128xf32>
    %54 = arith.mulf %51, %53 : vector<2x8x128xf32>
    %55 = arith.addf %43, %54 : vector<2x8x128xf32>
    %56 = vector.extract_strided_slice %27 {offsets = [0, 2, 0], sizes = [2, 1, 128], strides = [1, 1, 1]} : vector<2x8x128xf32> to vector<2x1x128xf32>
    %57 = vector.broadcast %56 : vector<2x1x128xf32> to vector<2x8x128xf32>
    %58 = arith.addf %30, %57 : vector<2x8x128xf32>
    %59 = arith.negf %58 : vector<2x8x128xf32>
    %60 = math.exp %59 : vector<2x8x128xf32>
    %cst_40 = arith.constant 1.000000e+00 : f32
    %61 = vector.broadcast %cst_40 : f32 to vector<2x8x128xf32>
    %62 = arith.addf %61, %60 : vector<2x8x128xf32>
    %63 = arith.divf %61, %62 : vector<2x8x128xf32>
    %64 = vector.extract_strided_slice %29 {offsets = [0, 2, 0], sizes = [2, 1, 128], strides = [1, 1, 1]} : vector<2x8x128xf32> to vector<2x1x128xf32>
    %65 = vector.broadcast %64 : vector<2x1x128xf32> to vector<2x8x128xf32>
    %66 = arith.mulf %63, %65 : vector<2x8x128xf32>
    %67 = arith.addf %55, %66 : vector<2x8x128xf32>
    %68 = vector.extract_strided_slice %27 {offsets = [0, 3, 0], sizes = [2, 1, 128], strides = [1, 1, 1]} : vector<2x8x128xf32> to vector<2x1x128xf32>
    %69 = vector.broadcast %68 : vector<2x1x128xf32> to vector<2x8x128xf32>
    %70 = arith.addf %30, %69 : vector<2x8x128xf32>
    %71 = arith.negf %70 : vector<2x8x128xf32>
    %72 = math.exp %71 : vector<2x8x128xf32>
    %cst_41 = arith.constant 1.000000e+00 : f32
    %73 = vector.broadcast %cst_41 : f32 to vector<2x8x128xf32>
    %74 = arith.addf %73, %72 : vector<2x8x128xf32>
    %75 = arith.divf %73, %74 : vector<2x8x128xf32>
    %76 = vector.extract_strided_slice %29 {offsets = [0, 3, 0], sizes = [2, 1, 128], strides = [1, 1, 1]} : vector<2x8x128xf32> to vector<2x1x128xf32>
    %77 = vector.broadcast %76 : vector<2x1x128xf32> to vector<2x8x128xf32>
    %78 = arith.mulf %75, %77 : vector<2x8x128xf32>
    %79 = arith.addf %67, %78 : vector<2x8x128xf32>
    %80 = vector.extract_strided_slice %27 {offsets = [0, 4, 0], sizes = [2, 1, 128], strides = [1, 1, 1]} : vector<2x8x128xf32> to vector<2x1x128xf32>
    %81 = vector.broadcast %80 : vector<2x1x128xf32> to vector<2x8x128xf32>
    %82 = arith.addf %30, %81 : vector<2x8x128xf32>
    %83 = arith.negf %82 : vector<2x8x128xf32>
    %84 = math.exp %83 : vector<2x8x128xf32>
    %cst_42 = arith.constant 1.000000e+00 : f32
    %85 = vector.broadcast %cst_42 : f32 to vector<2x8x128xf32>
    %86 = arith.addf %85, %84 : vector<2x8x128xf32>
    %87 = arith.divf %85, %86 : vector<2x8x128xf32>
    %88 = vector.extract_strided_slice %29 {offsets = [0, 4, 0], sizes = [2, 1, 128], strides = [1, 1, 1]} : vector<2x8x128xf32> to vector<2x1x128xf32>
    %89 = vector.broadcast %88 : vector<2x1x128xf32> to vector<2x8x128xf32>
    %90 = arith.mulf %87, %89 : vector<2x8x128xf32>
    %91 = arith.addf %79, %90 : vector<2x8x128xf32>
    %92 = vector.extract_strided_slice %27 {offsets = [0, 5, 0], sizes = [2, 1, 128], strides = [1, 1, 1]} : vector<2x8x128xf32> to vector<2x1x128xf32>
    %93 = vector.broadcast %92 : vector<2x1x128xf32> to vector<2x8x128xf32>
    %94 = arith.addf %30, %93 : vector<2x8x128xf32>
    %95 = arith.negf %94 : vector<2x8x128xf32>
    %96 = math.exp %95 : vector<2x8x128xf32>
    %cst_43 = arith.constant 1.000000e+00 : f32
    %97 = vector.broadcast %cst_43 : f32 to vector<2x8x128xf32>
    %98 = arith.addf %97, %96 : vector<2x8x128xf32>
    %99 = arith.divf %97, %98 : vector<2x8x128xf32>
    %100 = vector.extract_strided_slice %29 {offsets = [0, 5, 0], sizes = [2, 1, 128], strides = [1, 1, 1]} : vector<2x8x128xf32> to vector<2x1x128xf32>
    %101 = vector.broadcast %100 : vector<2x1x128xf32> to vector<2x8x128xf32>
    %102 = arith.mulf %99, %101 : vector<2x8x128xf32>
    %103 = arith.addf %91, %102 : vector<2x8x128xf32>
    %104 = vector.extract_strided_slice %27 {offsets = [0, 6, 0], sizes = [2, 1, 128], strides = [1, 1, 1]} : vector<2x8x128xf32> to vector<2x1x128xf32>
    %105 = vector.broadcast %104 : vector<2x1x128xf32> to vector<2x8x128xf32>
    %106 = arith.addf %30, %105 : vector<2x8x128xf32>
    %107 = arith.negf %106 : vector<2x8x128xf32>
    %108 = math.exp %107 : vector<2x8x128xf32>
    %cst_44 = arith.constant 1.000000e+00 : f32
    %109 = vector.broadcast %cst_44 : f32 to vector<2x8x128xf32>
    %110 = arith.addf %109, %108 : vector<2x8x128xf32>
    %111 = arith.divf %109, %110 : vector<2x8x128xf32>
    %112 = vector.extract_strided_slice %29 {offsets = [0, 6, 0], sizes = [2, 1, 128], strides = [1, 1, 1]} : vector<2x8x128xf32> to vector<2x1x128xf32>
    %113 = vector.broadcast %112 : vector<2x1x128xf32> to vector<2x8x128xf32>
    %114 = arith.mulf %111, %113 : vector<2x8x128xf32>
    %115 = arith.addf %103, %114 : vector<2x8x128xf32>
    %116 = vector.extract_strided_slice %27 {offsets = [0, 7, 0], sizes = [2, 1, 128], strides = [1, 1, 1]} : vector<2x8x128xf32> to vector<2x1x128xf32>
    %117 = vector.broadcast %116 : vector<2x1x128xf32> to vector<2x8x128xf32>
    %118 = arith.addf %30, %117 : vector<2x8x128xf32>
    %119 = arith.negf %118 : vector<2x8x128xf32>
    %120 = math.exp %119 : vector<2x8x128xf32>
    %cst_45 = arith.constant 1.000000e+00 : f32
    %121 = vector.broadcast %cst_45 : f32 to vector<2x8x128xf32>
    %122 = arith.addf %121, %120 : vector<2x8x128xf32>
    %123 = arith.divf %121, %122 : vector<2x8x128xf32>
    %124 = vector.extract_strided_slice %29 {offsets = [0, 7, 0], sizes = [2, 1, 128], strides = [1, 1, 1]} : vector<2x8x128xf32> to vector<2x1x128xf32>
    %125 = vector.broadcast %124 : vector<2x1x128xf32> to vector<2x8x128xf32>
    %126 = arith.mulf %123, %125 : vector<2x8x128xf32>
    %127 = arith.addf %115, %126 : vector<2x8x128xf32>
    %c0_46 = arith.constant 0 : index
    %c0_47 = arith.constant 0 : index
    %c0_48 = arith.constant 0 : index
    %128 = vector.load %arg12[%c0_46, %c0_47, %c0_48] : memref<2x8x128xf32, #tpu.memory_space<vmem>>, vector<2x8x128xf32>
    tpu.vector_store %arg12[%c0_46, %c0_47, %c0_48], %127 {strides = array<i32>} : memref<2x8x128xf32, #tpu.memory_space<vmem>>, vector<2x8x128xf32>,
    %c1_i32_49 = arith.constant 1 : i32
    %c0_50 = arith.constant 0 : index
    %c0_51 = arith.constant 0 : index
    %c0_52 = arith.constant 0 : index
    %129 = vector.load %arg12[%c0_50, %c0_51, %c0_52] : memref<2x8x128xf32, #tpu.memory_space<vmem>>, vector<2x8x128xf32>
    %c0_53 = arith.constant 0 : index
    %c0_54 = arith.constant 0 : index
    %c0_55 = arith.constant 0 : index
    %130 = vector.load %arg3[%c0_53, %c0_54, %c0_55] : memref<2x8x1xf32, #tpu.memory_space<vmem>>, vector<2x8x1xf32>
    %131 = vector.broadcast %130 : vector<2x8x1xf32> to vector<2x8x128xf32>
    %132 = arith.mulf %129, %131 : vector<2x8x128xf32>
    %133 = math.tanh %132 : vector<2x8x128xf32>
    %c0_56 = arith.constant 0 : index
    %c0_57 = arith.constant 0 : index
    %c0_58 = arith.constant 0 : index
    %134 = vector.load %arg8[%c0_56, %c0_57, %c0_58] : memref<2x8x128xf32, #tpu.memory_space<vmem>>, vector<2x8x128xf32>
    tpu.vector_store %arg8[%c0_56, %c0_57, %c0_58], %133 {strides = array<i32>} : memref<2x8x128xf32, #tpu.memory_space<vmem>>, vector<2x8x128xf32>,
    return
  }
  func.func @transform_0(%arg0: i32) -> (i32, i32, i32) {
    %c0_i32 = arith.constant 0 : i32
    %c0_i32_0 = arith.constant 0 : i32
    %c0_i32_1 = arith.constant 0 : i32
    return %arg0, %c0_i32, %c0_i32_0 : i32, i32, i32
  }
  func.func @transform_1(%arg0: i32) -> (i32, i32, i32) {
    %c0_i32 = arith.constant 0 : i32
    %c0_i32_0 = arith.constant 0 : i32
    %c0_i32_1 = arith.constant 0 : i32
    return %arg0, %c0_i32, %c0_i32_0 : i32, i32, i32
  }
  func.func @transform_2(%arg0: i32) -> (i32, i32, i32) {
    %c0_i32 = arith.constant 0 : i32
    %c0_i32_0 = arith.constant 0 : i32
    %c0_i32_1 = arith.constant 0 : i32
    return %arg0, %c0_i32, %c0_i32_0 : i32, i32, i32
  }
  func.func @transform_3(%arg0: i32) -> (i32, i32) {
    %c0_i32 = arith.constant 0 : i32
    %c0_i32_0 = arith.constant 0 : i32
    %c0_i32_1 = arith.constant 0 : i32
    return %c0_i32, %c0_i32_0 : i32, i32
  }
  func.func @transform_4(%arg0: i32) -> (i32, i32) {
    %c0_i32 = arith.constant 0 : i32
    %c0_i32_0 = arith.constant 0 : i32
    %c0_i32_1 = arith.constant 0 : i32
    return %c0_i32, %c0_i32_0 : i32, i32
  }
  func.func @transform_5(%arg0: i32) -> (i32, i32) {
    %c0_i32 = arith.constant 0 : i32
    %c0_i32_0 = arith.constant 0 : i32
    %c0_i32_1 = arith.constant 0 : i32
    return %c0_i32, %c0_i32_0 : i32, i32
  }
  func.func @transform_6(%arg0: i32) -> (i32, i32) {
    %c0_i32 = arith.constant 0 : i32
    %c0_i32_0 = arith.constant 0 : i32
    %c0_i32_1 = arith.constant 0 : i32
    return %c0_i32, %c0_i32_0 : i32, i32
  }
  func.func @transform_7(%arg0: i32) -> (i32, i32, i32) {
    %c0_i32 = arith.constant 0 : i32
    %c0_i32_0 = arith.constant 0 : i32
    %c0_i32_1 = arith.constant 0 : i32
    return %arg0, %c0_i32, %c0_i32_0 : i32, i32, i32
  }
}

module attributes {stable_mosaic.version = 11 : i64} {
  func.func @_relation_kernel(%arg0: i32, %arg1: memref<2x8x128xf32, #tpu.memory_space<vmem>>, %arg2: memref<2x8x1xf32, #tpu.memory_space<vmem>>, %arg3: memref<2x8x1xf32, #tpu.memory_space<vmem>>, %arg4: memref<128x128xf32, #tpu.memory_space<vmem>>, %arg5: memref<1x128xf32, #tpu.memory_space<vmem>>, %arg6: memref<128x128xf32, #tpu.memory_space<vmem>>, %arg7: memref<1x128xf32, #tpu.memory_space<vmem>>, %arg8: memref<2x8x128xf32, #tpu.memory_space<vmem>>, %arg9: memref<2x8x128xf32, #tpu.memory_space<vmem>>, %arg10: memref<2x8x128xf32, #tpu.memory_space<vmem>>, %arg11: memref<2x8x128xf32, #tpu.memory_space<vmem>>, %arg12: memref<2x8x128xf32, #tpu.memory_space<vmem>>) attributes {dimension_semantics = [#tpu.dimension_semantics<parallel>], iteration_bounds = array<i64: 2>, scalar_prefetch = 0 : i64, scratch_operands = 4 : i64, tpu.core_type = #tpu.core_type<tc>, window_params = [{transform_indices = @transform_0, window_bounds = array<i64: 2, 8, 128>}, {transform_indices = @transform_1, window_bounds = array<i64: 2, 8, 1>}, {transform_indices = @transform_2, window_bounds = array<i64: 2, 8, 1>}, {pipeline_mode = #tpu.pipeline_mode<synchronous>, transform_indices = @transform_3, window_bounds = array<i64: 128, 128>}, {pipeline_mode = #tpu.pipeline_mode<synchronous>, transform_indices = @transform_4, window_bounds = array<i64: 1, 128>}, {pipeline_mode = #tpu.pipeline_mode<synchronous>, transform_indices = @transform_5, window_bounds = array<i64: 128, 128>}, {pipeline_mode = #tpu.pipeline_mode<synchronous>, transform_indices = @transform_6, window_bounds = array<i64: 1, 128>}, {transform_indices = @transform_7, window_bounds = array<i64: 2, 8, 128>}]} {
    %c0 = arith.constant 0 : index
    %c0_0 = arith.constant 0 : index
    %c0_1 = arith.constant 0 : index
    %0 = vector.load %arg1[%c0, %c0_0, %c0_1] : memref<2x8x128xf32, #tpu.memory_space<vmem>>, vector<2x8x128xf32>
    %1 = vector.shape_cast %0 : vector<2x8x128xf32> to vector<16x128xf32>
    %c0_2 = arith.constant 0 : index
    %c0_3 = arith.constant 0 : index
    %2 = vector.load %arg4[%c0_2, %c0_3] : memref<128x128xf32, #tpu.memory_space<vmem>>, vector<128x128xf32>
    %c0_4 = arith.constant 0 : index
    %c0_5 = arith.constant 0 : index
    %3 = vector.load %arg6[%c0_4, %c0_5] : memref<128x128xf32, #tpu.memory_space<vmem>>, vector<128x128xf32>
    %cst = arith.constant dense<0.000000e+00> : vector<16x128xf32>
    %4 = tpu.matmul %1, %2, %cst {dimension_numbers = #tpu.dot_dimension_numbers<[1], [0], [0], [1], [0, 0, 1, 1], [], []>} : vector<16x128xf32>, vector<128x128xf32>, vector<16x128xf32> -> vector<16x128xf32>
    %c0_6 = arith.constant 0 : index
    %c0_7 = arith.constant 0 : index
    %5 = vector.load %arg5[%c0_6, %c0_7] : memref<1x128xf32, #tpu.memory_space<vmem>>, vector<1x128xf32>
    %6 = vector.broadcast %5 : vector<1x128xf32> to vector<16x128xf32>
    %7 = arith.addf %4, %6 : vector<16x128xf32>
    %cst_8 = arith.constant dense<0.000000e+00> : vector<16x128xf32>
    %8 = tpu.matmul %1, %3, %cst_8 {dimension_numbers = #tpu.dot_dimension_numbers<[1], [0], [0], [1], [0, 0, 1, 1], [], []>} : vector<16x128xf32>, vector<128x128xf32>, vector<16x128xf32> -> vector<16x128xf32>
    %c0_9 = arith.constant 0 : index
    %c0_10 = arith.constant 0 : index
    %9 = vector.load %arg7[%c0_9, %c0_10] : memref<1x128xf32, #tpu.memory_space<vmem>>, vector<1x128xf32>
    %10 = vector.broadcast %9 : vector<1x128xf32> to vector<16x128xf32>
    %11 = arith.addf %8, %10 : vector<16x128xf32>
    %12 = vector.shape_cast %7 : vector<16x128xf32> to vector<2x8x128xf32>
    %c0_11 = arith.constant 0 : index
    %c0_12 = arith.constant 0 : index
    %c0_13 = arith.constant 0 : index
    %13 = vector.load %arg9[%c0_11, %c0_12, %c0_13] : memref<2x8x128xf32, #tpu.memory_space<vmem>>, vector<2x8x128xf32>
    tpu.vector_store %arg9[%c0_11, %c0_12, %c0_13], %12 {strides = array<i32>} : memref<2x8x128xf32, #tpu.memory_space<vmem>>, vector<2x8x128xf32>,
    %14 = vector.shape_cast %11 : vector<16x128xf32> to vector<2x8x128xf32>
    %c0_14 = arith.constant 0 : index
    %c0_15 = arith.constant 0 : index
    %c0_16 = arith.constant 0 : index
    %15 = vector.load %arg10[%c0_14, %c0_15, %c0_16] : memref<2x8x128xf32, #tpu.memory_space<vmem>>, vector<2x8x128xf32>
    tpu.vector_store %arg10[%c0_14, %c0_15, %c0_16], %14 {strides = array<i32>} : memref<2x8x128xf32, #tpu.memory_space<vmem>>, vector<2x8x128xf32>,
    %c0_17 = arith.constant 0 : index
    %c0_18 = arith.constant 0 : index
    %c0_19 = arith.constant 0 : index
    %16 = vector.load %arg2[%c0_17, %c0_18, %c0_19] : memref<2x8x1xf32, #tpu.memory_space<vmem>>, vector<2x8x1xf32>
    %17 = vector.broadcast %16 : vector<2x8x1xf32> to vector<2x8x128xf32>
    %18 = arith.mulf %0, %17 : vector<2x8x128xf32>
    %c0_20 = arith.constant 0 : index
    %c0_21 = arith.constant 0 : index
    %c0_22 = arith.constant 0 : index
    %19 = vector.load %arg11[%c0_20, %c0_21, %c0_22] : memref<2x8x128xf32, #tpu.memory_space<vmem>>, vector<2x8x128xf32>
    tpu.vector_store %arg11[%c0_20, %c0_21, %c0_22], %18 {strides = array<i32>} : memref<2x8x128xf32, #tpu.memory_space<vmem>>, vector<2x8x128xf32>,
    %cst_23 = arith.constant 0.000000e+00 : f32
    %20 = vector.broadcast %cst_23 : f32 to vector<2x8x128xf32>
    %c0_24 = arith.constant 0 : index
    %c0_25 = arith.constant 0 : index
    %c0_26 = arith.constant 0 : index
    %21 = vector.load %arg12[%c0_24, %c0_25, %c0_26] : memref<2x8x128xf32, #tpu.memory_space<vmem>>, vector<2x8x128xf32>
    tpu.vector_store %arg12[%c0_24, %c0_25, %c0_26], %20 {strides = array<i32>} : memref<2x8x128xf32, #tpu.memory_space<vmem>>, vector<2x8x128xf32>,
    %c0_i32 = arith.constant 0 : i32
    %c1_i32 = arith.constant 1 : i32
    %22 = arith.muli %c0_i32, %c1_i32 : i32
    %c0_i32_27 = arith.constant 0 : i32
    %23 = arith.addi %c0_i32_27, %22 : i32
    %c8_i32 = arith.constant 8 : i32
    %24 = arith.muli %23, %c8_i32 : i32
    %25 = tpu.assume_multiple %24, 8 : i32
    %c0_28 = arith.constant 0 : index
    %26 = arith.index_cast %25 : i32 to index
    %c0_29 = arith.constant 0 : index
    %27 = vector.load %arg10[%c0_28, %26, %c0_29] : memref<2x8x128xf32, #tpu.memory_space<vmem>>, vector<2x8x128xf32>
    %c0_30 = arith.constant 0 : index
    %28 = arith.index_cast %25 : i32 to index
    %c0_31 = arith.constant 0 : index
    %29 = vector.load %arg11[%c0_30, %28, %c0_31] : memref<2x8x128xf32, #tpu.memory_space<vmem>>, vector<2x8x128xf32>
    %c0_32 = arith.constant 0 : index
    %c0_33 = arith.constant 0 : index
    %c0_34 = arith.constant 0 : index
    %30 = vector.load %arg9[%c0_32, %c0_33, %c0_34] : memref<2x8x128xf32, #tpu.memory_space<vmem>>, vector<2x8x128xf32>
    %c0_35 = arith.constant 0 : index
    %c0_36 = arith.constant 0 : index
    %c0_37 = arith.constant 0 : index
    %31 = vector.load %arg12[%c0_35, %c0_36, %c0_37] : memref<2x8x128xf32, #tpu.memory_space<vmem>>, vector<2x8x128xf32>
    %32 = vector.extract_strided_slice %27 {offsets = [0, 0, 0], sizes = [2, 1, 128], strides = [1, 1, 1]} : vector<2x8x128xf32> to vector<2x1x128xf32>
    %33 = vector.broadcast %32 : vector<2x1x128xf32> to vector<2x8x128xf32>
    %34 = arith.addf %30, %33 : vector<2x8x128xf32>
    %35 = arith.negf %34 : vector<2x8x128xf32>
    %36 = math.exp %35 : vector<2x8x128xf32>
    %cst_38 = arith.constant 1.000000e+00 : f32
    %37 = vector.broadcast %cst_38 : f32 to vector<2x8x128xf32>
    %38 = arith.addf %37, %36 : vector<2x8x128xf32>
    %39 = arith.divf %37, %38 : vector<2x8x128xf32>
    %40 = vector.extract_strided_slice %29 {offsets = [0, 0, 0], sizes = [2, 1, 128], strides = [1, 1, 1]} : vector<2x8x128xf32> to vector<2x1x128xf32>
    %41 = vector.broadcast %40 : vector<2x1x128xf32> to vector<2x8x128xf32>
    %42 = arith.mulf %39, %41 : vector<2x8x128xf32>
    %43 = arith.addf %31, %42 : vector<2x8x128xf32>
    %44 = vector.extract_strided_slice %27 {offsets = [0, 1, 0], sizes = [2, 1, 128], strides = [1, 1, 1]} : vector<2x8x128xf32> to vector<2x1x128xf32>
    %45 = vector.broadcast %44 : vector<2x1x128xf32> to vector<2x8x128xf32>
    %46 = arith.addf %30, %45 : vector<2x8x128xf32>
    %47 = arith.negf %46 : vector<2x8x128xf32>
    %48 = math.exp %47 : vector<2x8x128xf32>
    %cst_39 = arith.constant 1.000000e+00 : f32
    %49 = vector.broadcast %cst_39 : f32 to vector<2x8x128xf32>
    %50 = arith.addf %49, %48 : vector<2x8x128xf32>
    %51 = arith.divf %49, %50 : vector<2x8x128xf32>
    %52 = vector.extract_strided_slice %29 {offsets = [0, 1, 0], sizes = [2, 1, 128], strides = [1, 1, 1]} : vector<2x8x128xf32> to vector<2x1x128xf32>
    %53 = vector.broadcast %52 : vector<2x1x128xf32> to vector<2x8x128xf32>
    %54 = arith.mulf %51, %53 : vector<2x8x128xf32>
    %55 = arith.addf %43, %54 : vector<2x8x128xf32>
    %56 = vector.extract_strided_slice %27 {offsets = [0, 2, 0], sizes = [2, 1, 128], strides = [1, 1, 1]} : vector<2x8x128xf32> to vector<2x1x128xf32>
    %57 = vector.broadcast %56 : vector<2x1x128xf32> to vector<2x8x128xf32>
    %58 = arith.addf %30, %57 : vector<2x8x128xf32>
    %59 = arith.negf %58 : vector<2x8x128xf32>
    %60 = math.exp %59 : vector<2x8x128xf32>
    %cst_40 = arith.constant 1.000000e+00 : f32
    %61 = vector.broadcast %cst_40 : f32 to vector<2x8x128xf32>
    %62 = arith.addf %61, %60 : vector<2x8x128xf32>
    %63 = arith.divf %61, %62 : vector<2x8x128xf32>
    %64 = vector.extract_strided_slice %29 {offsets = [0, 2, 0], sizes = [2, 1, 128], strides = [1, 1, 1]} : vector<2x8x128xf32> to vector<2x1x128xf32>
    %65 = vector.broadcast %64 : vector<2x1x128xf32> to vector<2x8x128xf32>
    %66 = arith.mulf %63, %65 : vector<2x8x128xf32>
    %67 = arith.addf %55, %66 : vector<2x8x128xf32>
    %68 = vector.extract_strided_slice %27 {offsets = [0, 3, 0], sizes = [2, 1, 128], strides = [1, 1, 1]} : vector<2x8x128xf32> to vector<2x1x128xf32>
    %69 = vector.broadcast %68 : vector<2x1x128xf32> to vector<2x8x128xf32>
    %70 = arith.addf %30, %69 : vector<2x8x128xf32>
    %71 = arith.negf %70 : vector<2x8x128xf32>
    %72 = math.exp %71 : vector<2x8x128xf32>
    %cst_41 = arith.constant 1.000000e+00 : f32
    %73 = vector.broadcast %cst_41 : f32 to vector<2x8x128xf32>
    %74 = arith.addf %73, %72 : vector<2x8x128xf32>
    %75 = arith.divf %73, %74 : vector<2x8x128xf32>
    %76 = vector.extract_strided_slice %29 {offsets = [0, 3, 0], sizes = [2, 1, 128], strides = [1, 1, 1]} : vector<2x8x128xf32> to vector<2x1x128xf32>
    %77 = vector.broadcast %76 : vector<2x1x128xf32> to vector<2x8x128xf32>
    %78 = arith.mulf %75, %77 : vector<2x8x128xf32>
    %79 = arith.addf %67, %78 : vector<2x8x128xf32>
    %80 = vector.extract_strided_slice %27 {offsets = [0, 4, 0], sizes = [2, 1, 128], strides = [1, 1, 1]} : vector<2x8x128xf32> to vector<2x1x128xf32>
    %81 = vector.broadcast %80 : vector<2x1x128xf32> to vector<2x8x128xf32>
    %82 = arith.addf %30, %81 : vector<2x8x128xf32>
    %83 = arith.negf %82 : vector<2x8x128xf32>
    %84 = math.exp %83 : vector<2x8x128xf32>
    %cst_42 = arith.constant 1.000000e+00 : f32
    %85 = vector.broadcast %cst_42 : f32 to vector<2x8x128xf32>
    %86 = arith.addf %85, %84 : vector<2x8x128xf32>
    %87 = arith.divf %85, %86 : vector<2x8x128xf32>
    %88 = vector.extract_strided_slice %29 {offsets = [0, 4, 0], sizes = [2, 1, 128], strides = [1, 1, 1]} : vector<2x8x128xf32> to vector<2x1x128xf32>
    %89 = vector.broadcast %88 : vector<2x1x128xf32> to vector<2x8x128xf32>
    %90 = arith.mulf %87, %89 : vector<2x8x128xf32>
    %91 = arith.addf %79, %90 : vector<2x8x128xf32>
    %92 = vector.extract_strided_slice %27 {offsets = [0, 5, 0], sizes = [2, 1, 128], strides = [1, 1, 1]} : vector<2x8x128xf32> to vector<2x1x128xf32>
    %93 = vector.broadcast %92 : vector<2x1x128xf32> to vector<2x8x128xf32>
    %94 = arith.addf %30, %93 : vector<2x8x128xf32>
    %95 = arith.negf %94 : vector<2x8x128xf32>
    %96 = math.exp %95 : vector<2x8x128xf32>
    %cst_43 = arith.constant 1.000000e+00 : f32
    %97 = vector.broadcast %cst_43 : f32 to vector<2x8x128xf32>
    %98 = arith.addf %97, %96 : vector<2x8x128xf32>
    %99 = arith.divf %97, %98 : vector<2x8x128xf32>
    %100 = vector.extract_strided_slice %29 {offsets = [0, 5, 0], sizes = [2, 1, 128], strides = [1, 1, 1]} : vector<2x8x128xf32> to vector<2x1x128xf32>
    %101 = vector.broadcast %100 : vector<2x1x128xf32> to vector<2x8x128xf32>
    %102 = arith.mulf %99, %101 : vector<2x8x128xf32>
    %103 = arith.addf %91, %102 : vector<2x8x128xf32>
    %104 = vector.extract_strided_slice %27 {offsets = [0, 6, 0], sizes = [2, 1, 128], strides = [1, 1, 1]} : vector<2x8x128xf32> to vector<2x1x128xf32>
    %105 = vector.broadcast %104 : vector<2x1x128xf32> to vector<2x8x128xf32>
    %106 = arith.addf %30, %105 : vector<2x8x128xf32>
    %107 = arith.negf %106 : vector<2x8x128xf32>
    %108 = math.exp %107 : vector<2x8x128xf32>
    %cst_44 = arith.constant 1.000000e+00 : f32
    %109 = vector.broadcast %cst_44 : f32 to vector<2x8x128xf32>
    %110 = arith.addf %109, %108 : vector<2x8x128xf32>
    %111 = arith.divf %109, %110 : vector<2x8x128xf32>
    %112 = vector.extract_strided_slice %29 {offsets = [0, 6, 0], sizes = [2, 1, 128], strides = [1, 1, 1]} : vector<2x8x128xf32> to vector<2x1x128xf32>
    %113 = vector.broadcast %112 : vector<2x1x128xf32> to vector<2x8x128xf32>
    %114 = arith.mulf %111, %113 : vector<2x8x128xf32>
    %115 = arith.addf %103, %114 : vector<2x8x128xf32>
    %116 = vector.extract_strided_slice %27 {offsets = [0, 7, 0], sizes = [2, 1, 128], strides = [1, 1, 1]} : vector<2x8x128xf32> to vector<2x1x128xf32>
    %117 = vector.broadcast %116 : vector<2x1x128xf32> to vector<2x8x128xf32>
    %118 = arith.addf %30, %117 : vector<2x8x128xf32>
    %119 = arith.negf %118 : vector<2x8x128xf32>
    %120 = math.exp %119 : vector<2x8x128xf32>
    %cst_45 = arith.constant 1.000000e+00 : f32
    %121 = vector.broadcast %cst_45 : f32 to vector<2x8x128xf32>
    %122 = arith.addf %121, %120 : vector<2x8x128xf32>
    %123 = arith.divf %121, %122 : vector<2x8x128xf32>
    %124 = vector.extract_strided_slice %29 {offsets = [0, 7, 0], sizes = [2, 1, 128], strides = [1, 1, 1]} : vector<2x8x128xf32> to vector<2x1x128xf32>
    %125 = vector.broadcast %124 : vector<2x1x128xf32> to vector<2x8x128xf32>
    %126 = arith.mulf %123, %125 : vector<2x8x128xf32>
    %127 = arith.addf %115, %126 : vector<2x8x128xf32>
    %c0_46 = arith.constant 0 : index
    %c0_47 = arith.constant 0 : index
    %c0_48 = arith.constant 0 : index
    %128 = vector.load %arg12[%c0_46, %c0_47, %c0_48] : memref<2x8x128xf32, #tpu.memory_space<vmem>>, vector<2x8x128xf32>
    tpu.vector_store %arg12[%c0_46, %c0_47, %c0_48], %127 {strides = array<i32>} : memref<2x8x128xf32, #tpu.memory_space<vmem>>, vector<2x8x128xf32>,
    %c1_i32_49 = arith.constant 1 : i32
    %c0_50 = arith.constant 0 : index
    %c0_51 = arith.constant 0 : index
    %c0_52 = arith.constant 0 : index
    %129 = vector.load %arg12[%c0_50, %c0_51, %c0_52] : memref<2x8x128xf32, #tpu.memory_space<vmem>>, vector<2x8x128xf32>
    %c0_53 = arith.constant 0 : index
    %c0_54 = arith.constant 0 : index
    %c0_55 = arith.constant 0 : index
    %130 = vector.load %arg3[%c0_53, %c0_54, %c0_55] : memref<2x8x1xf32, #tpu.memory_space<vmem>>, vector<2x8x1xf32>
    %131 = vector.broadcast %130 : vector<2x8x1xf32> to vector<2x8x128xf32>
    %132 = arith.mulf %129, %131 : vector<2x8x128xf32>
    %133 = math.tanh %132 : vector<2x8x128xf32>
    %c0_56 = arith.constant 0 : index
    %c0_57 = arith.constant 0 : index
    %c0_58 = arith.constant 0 : index
    %134 = vector.load %arg8[%c0_56, %c0_57, %c0_58] : memref<2x8x128xf32, #tpu.memory_space<vmem>>, vector<2x8x128xf32>
    tpu.vector_store %arg8[%c0_56, %c0_57, %c0_58], %133 {strides = array<i32>} : memref<2x8x128xf32, #tpu.memory_space<vmem>>, vector<2x8x128xf32>,
    return
  }
  func.func @transform_0(%arg0: i32) -> (i32, i32, i32) {
    %c0_i32 = arith.constant 0 : i32
    %c0_i32_0 = arith.constant 0 : i32
    %c0_i32_1 = arith.constant 0 : i32
    return %arg0, %c0_i32, %c0_i32_0 : i32, i32, i32
  }
  func.func @transform_1(%arg0: i32) -> (i32, i32, i32) {
    %c0_i32 = arith.constant 0 : i32
    %c0_i32_0 = arith.constant 0 : i32
    %c0_i32_1 = arith.constant 0 : i32
    return %arg0, %c0_i32, %c0_i32_0 : i32, i32, i32
  }
  func.func @transform_2(%arg0: i32) -> (i32, i32, i32) {
    %c0_i32 = arith.constant 0 : i32
    %c0_i32_0 = arith.constant 0 : i32
    %c0_i32_1 = arith.constant 0 : i32
    return %arg0, %c0_i32, %c0_i32_0 : i32, i32, i32
  }
  func.func @transform_3(%arg0: i32) -> (i32, i32) {
    %c0_i32 = arith.constant 0 : i32
    %c0_i32_0 = arith.constant 0 : i32
    %c0_i32_1 = arith.constant 0 : i32
    return %c0_i32, %c0_i32_0 : i32, i32
  }
  func.func @transform_4(%arg0: i32) -> (i32, i32) {
    %c0_i32 = arith.constant 0 : i32
    %c0_i32_0 = arith.constant 0 : i32
    %c0_i32_1 = arith.constant 0 : i32
    return %c0_i32, %c0_i32_0 : i32, i32
  }
  func.func @transform_5(%arg0: i32) -> (i32, i32) {
    %c0_i32 = arith.constant 0 : i32
    %c0_i32_0 = arith.constant 0 : i32
    %c0_i32_1 = arith.constant 0 : i32
    return %c0_i32, %c0_i32_0 : i32, i32
  }
  func.func @transform_6(%arg0: i32) -> (i32, i32) {
    %c0_i32 = arith.constant 0 : i32
    %c0_i32_0 = arith.constant 0 : i32
    %c0_i32_1 = arith.constant 0 : i32
    return %c0_i32, %c0_i32_0 : i32, i32
  }
  func.func @transform_7(%arg0: i32) -> (i32, i32, i32) {
    %c0_i32 = arith.constant 0 : i32
    %c0_i32_0 = arith.constant 0 : i32
    %c0_i32_1 = arith.constant 0 : i32
    return %arg0, %c0_i32, %c0_i32_0 : i32, i32, i32
  }
}

</mosaic_0001>

<llo_original>
// kernel: tpu_custom_call.1
$region0: #{tpu_custom_call.1}
  #allocation0 [shape = 'u32[]', space=smem, size = 0x4, offset = 0x4, fixed_abs, tag = 'smem constant byte address 0x4 - core index']
  #allocation1 [shape = 'u32[144,128]{1,0:T(1,128)}', space=vmem, size = 0x12000, scoped, tag = 'internal scratch']
  #allocation2 [shape = 'f32[2,8,128]{2,1,0:T(8,128)}', space=vmem, size = 0x2000, scoped, tag = 'scratch operand']
  #allocation3 [shape = 'f32[2,8,128]{2,1,0:T(8,128)}', space=vmem, size = 0x2000, scoped, tag = 'scratch operand']
  #allocation4 [shape = 'f32[2,8,128]{2,1,0:T(8,128)}', space=vmem, size = 0x2000, scoped, tag = 'scratch operand']
  #allocation5 [shape = 'f32[2,8,128]{2,1,0:T(8,128)}', space=vmem, size = 0x2000, scoped, tag = 'scratch operand']
  %s0 = inlined_call_operand.vmem [shape: f32[4,8,128], index: 0, kind: input, shape index: {}]
  %s1 = inlined_call_operand.vmem [shape: f32[4,8,1], index: 1, kind: input, shape index: {}]
  %s2 = inlined_call_operand.vmem [shape: f32[4,8,1], index: 2, kind: input, shape index: {}]
  %s3 = inlined_call_operand.hbm [shape: f32[128,128], index: 3, kind: input, shape index: {}]
  %s4 = inlined_call_operand.vmem [shape: f32[1,128], index: 4, kind: input, shape index: {}]
  %s5 = inlined_call_operand.hbm [shape: f32[128,128], index: 5, kind: input, shape index: {}]
  %s6 = inlined_call_operand.vmem [shape: f32[1,128], index: 6, kind: input, shape index: {}]
  %s7 = inlined_call_operand.hbm [shape: f32[4,8,128], index: 7, kind: output, shape index: {}]
  %s8 = sld [smem:[#allocation0]]
  $region69: #{tpu_custom_call.1} parent=0
    _
  %s10 = ssub.s32 1, %s8
  %s11 = scalar_select 0, %s10, %s8
  $region1: #{tpu_custom_call.1} parent=0
    #allocation6 [shape = 'u8[65536]{0}', space=vmem, size = 0x10000, scoped, tag = 'input window, operand 3, single buffered']
    #allocation7 [shape = 's32[2]{0}', space=sflag, size = 0x8, scoped, tag = 'scoped memory for tpu_custom_call.1']
    #allocation8 [shape = 's32[2]{0}', space=sflag, size = 0x8, scoped, tag = 'scoped memory for tpu_custom_call.1']
    #allocation9 [shape = 'u8[65536]{0}', space=vmem, size = 0x10000, scoped, tag = 'input window, operand 5, single buffered']
    #allocation10 [shape = 's32[1]{0}', space=sflag, size = 0x4, scoped, tag = 'scoped memory for tpu_custom_call.1']
    #allocation11 [shape = 'u8[16384]{0}', space=vmem, size = 0x4000, scoped, tag = 'output window, operand 0']
    %12 = vsyncpa [#allocation7], 0
    %13 = vsyncpa [#allocation10], 0
    %14 = vsyncpa [#allocation8], 0
    %s15 = scalar_lea.sflag [#allocation8], 1
    %16 = vsyncpa %s15, 0
    loop: start=0, step=1, limit=4
    $region2: #{tpu_custom_call.1} parent=1 // loop_pre_header
      _
    $region3: #{tpu_custom_call.1} parent=1 // loop_header
      %s18 = sphi 0, %s22
      %p19 = scmp.ge.s32.totalorder %s18, 4
      %s28 = sphi 0, %s30
      %s31 = sphi 0, %s28
      %s32 = sphi 0, %s31
      %s48 = sphi 0, %s32
      %s54 = sphi 0, %s56
      %s57 = sphi 0, %s54
      %s58 = sphi 0, %s57
      %s74 = sphi 0, %s58
      %s80 = sphi 0, %s82
      %s83 = sphi 0, %s80
      %s84 = sphi 0, %s83
      %s100 = sphi 0, %s84
      %s104 = sphi 0, %s104
      %s106 = sphi 0, %s104
      %s107 = sphi 0, %s106
      %s121 = sphi 0, %s107
      %s125 = sphi 0, %s125
      %s127 = sphi 0, %s125
      %s128 = sphi 0, %s127
      %s142 = sphi 0, %s128
      %s146 = sphi 0, %s146
      %s148 = sphi 0, %s146
      %s149 = sphi 0, %s148
      %s163 = sphi 0, %s149
      %s167 = sphi 0, %s167
      %s169 = sphi 0, %s167
      %s170 = sphi 0, %s169
      %s184 = sphi 0, %s170
      %s190 = sphi 0, %s192
      %s193 = sphi 0, %s190
      %s194 = sphi 0, %s193
      %s210 = sphi 0, %s194
    $region4: #{tpu_custom_call.1} parent=1 // loop_header_branch
      %21 = sbr.rel (%p19) target = $region8
    $region5: #{tpu_custom_call.1} parent=1 // loop_body
      %s23 = ssub.s32 %s18, 1
      %s24 = ssub.s32 %s18, 2
      %s25 = sadd.s32 %s18, 1
      %s26 = ssub.s32 %s18, %s25
      %p27 = scmp.eq.s32.totalorder %s26, 0
      %s29 = sadd.s32 %s28, 1
      %s30 = scalar_select %p27, %s28, %s29
      %p33 = pneg %p27
      %p34 = scmp.eq.s32.totalorder %s18, 1
      %p35 = por %p33, %p34
      %p36 = scmp.ne.s32.totalorder %s28, %s31
      %p37 = scmp.eq.s32.totalorder %s18, 0
      %p38 = por %p36, %p37
      %p39 = scmp.ne.s32.totalorder %s28, %s31
      %p40 = scmp.eq.s32.totalorder %s23, 1
      %p41 = por %p39, %p40
      %p42 = scmp.ne.s32.totalorder %s31, %s32
      %p43 = scmp.eq.s32.totalorder %s23, 0
      %p44 = por %p42, %p43
      %p45 = scmp.ne.s32.totalorder %s31, %s32
      %p46 = scmp.eq.s32.totalorder %s24, 1
      %p47 = por %p45, %p46
      %p49 = scmp.ne.s32.totalorder %s32, %s48
      %p50 = scmp.eq.s32.totalorder %s24, 0
      %p51 = por %p49, %p50
      %s52 = ssub.s32 %s18, %s25
      %p53 = scmp.eq.s32.totalorder %s52, 0
      %s55 = sadd.s32 %s54, 1
      %s56 = scalar_select %p53, %s54, %s55
      %p59 = pneg %p53
      %p60 = scmp.eq.s32.totalorder %s18, 1
      %p61 = por %p59, %p60
      %p62 = scmp.ne.s32.totalorder %s54, %s57
      %p63 = scmp.eq.s32.totalorder %s18, 0
      %p64 = por %p62, %p63
      %p65 = scmp.ne.s32.totalorder %s54, %s57
      %p66 = scmp.eq.s32.totalorder %s23, 1
      %p67 = por %p65, %p66
      %p68 = scmp.ne.s32.totalorder %s57, %s58
      %p69 = scmp.eq.s32.totalorder %s23, 0
      %p70 = por %p68, %p69
      %p71 = scmp.ne.s32.totalorder %s57, %s58
      %p72 = scmp.eq.s32.totalorder %s24, 1
      %p73 = por %p71, %p72
      %p75 = scmp.ne.s32.totalorder %s58, %s74
      %p76 = scmp.eq.s32.totalorder %s24, 0
      %p77 = por %p75, %p76
      %s78 = ssub.s32 %s18, %s25
      %p79 = scmp.eq.s32.totalorder %s78, 0
      %s81 = sadd.s32 %s80, 1
      %s82 = scalar_select %p79, %s80, %s81
      %p85 = pneg %p79
      %p86 = scmp.eq.s32.totalorder %s18, 1
      %p87 = por %p85, %p86
      %p88 = scmp.ne.s32.totalorder %s80, %s83
      %p89 = scmp.eq.s32.totalorder %s18, 0
      %p90 = por %p88, %p89
      %p91 = scmp.ne.s32.totalorder %s80, %s83
      %p92 = scmp.eq.s32.totalorder %s23, 1
      %p93 = por %p91, %p92
      %p94 = scmp.ne.s32.totalorder %s83, %s84
      %p95 = scmp.eq.s32.totalorder %s23, 0
      %p96 = por %p94, %p95
      %p97 = scmp.ne.s32.totalorder %s83, %s84
      %p98 = scmp.eq.s32.totalorder %s24, 1
      %p99 = por %p97, %p98
      %p101 = scmp.ne.s32.totalorder %s84, %s100
      %p102 = scmp.eq.s32.totalorder %s24, 0
      %p103 = por %p101, %p102
      %s105 = sadd.s32 %s104, 1
      %p108 = scmp.eq.s32.totalorder %s18, 1
      %p109 = scmp.ne.s32.totalorder %s104, %s106
      %p110 = scmp.eq.s32.totalorder %s18, 0
      %p111 = por %p109, %p110
      %p112 = scmp.ne.s32.totalorder %s104, %s106
      %p113 = scmp.eq.s32.totalorder %s23, 1
      %p114 = por %p112, %p113
      %p115 = scmp.ne.s32.totalorder %s106, %s107
      %p116 = scmp.eq.s32.totalorder %s23, 0
      %p117 = por %p115, %p116
      %p118 = scmp.ne.s32.totalorder %s106, %s107
      %p119 = scmp.eq.s32.totalorder %s24, 1
      %p120 = por %p118, %p119
      %p122 = scmp.ne.s32.totalorder %s107, %s121
      %p123 = scmp.eq.s32.totalorder %s24, 0
      %p124 = por %p122, %p123
      %s126 = sadd.s32 %s125, 1
      %p129 = scmp.eq.s32.totalorder %s18, 1
      %p130 = scmp.ne.s32.totalorder %s125, %s127
      %p131 = scmp.eq.s32.totalorder %s18, 0
      %p132 = por %p130, %p131
      %p133 = scmp.ne.s32.totalorder %s125, %s127
      %p134 = scmp.eq.s32.totalorder %s23, 1
      %p135 = por %p133, %p134
      %p136 = scmp.ne.s32.totalorder %s127, %s128
      %p137 = scmp.eq.s32.totalorder %s23, 0
      %p138 = por %p136, %p137
      %p139 = scmp.ne.s32.totalorder %s127, %s128
      %p140 = scmp.eq.s32.totalorder %s24, 1
      %p141 = por %p139, %p140
      %p143 = scmp.ne.s32.totalorder %s128, %s142
      %p144 = scmp.eq.s32.totalorder %s24, 0
      %p145 = por %p143, %p144
      %s147 = sadd.s32 %s146, 1
      %p150 = scmp.eq.s32.totalorder %s18, 1
      %p151 = scmp.ne.s32.totalorder %s146, %s148
      %p152 = scmp.eq.s32.totalorder %s18, 0
      %p153 = por %p151, %p152
      %p154 = scmp.ne.s32.totalorder %s146, %s148
      %p155 = scmp.eq.s32.totalorder %s23, 1
      %p156 = por %p154, %p155
      %p157 = scmp.ne.s32.totalorder %s148, %s149
      %p158 = scmp.eq.s32.totalorder %s23, 0
      %p159 = por %p157, %p158
      %p160 = scmp.ne.s32.totalorder %s148, %s149
      %p161 = scmp.eq.s32.totalorder %s24, 1
      %p162 = por %p160, %p161
      %p164 = scmp.ne.s32.totalorder %s149, %s163
      %p165 = scmp.eq.s32.totalorder %s24, 0
      %p166 = por %p164, %p165
      %s168 = sadd.s32 %s167, 1
      %p171 = scmp.eq.s32.totalorder %s18, 1
      %p172 = scmp.ne.s32.totalorder %s167, %s169
      %p173 = scmp.eq.s32.totalorder %s18, 0
      %p174 = por %p172, %p173
      %p175 = scmp.ne.s32.totalorder %s167, %s169
      %p176 = scmp.eq.s32.totalorder %s23, 1
      %p177 = por %p175, %p176
      %p178 = scmp.ne.s32.totalorder %s169, %s170
      %p179 = scmp.eq.s32.totalorder %s23, 0
      %p180 = por %p178, %p179
      %p181 = scmp.ne.s32.totalorder %s169, %s170
      %p182 = scmp.eq.s32.totalorder %s24, 1
      %p183 = por %p181, %p182
      %p185 = scmp.ne.s32.totalorder %s170, %s184
      %p186 = scmp.eq.s32.totalorder %s24, 0
      %p187 = por %p185, %p186
      %s188 = ssub.s32 %s18, %s25
      %p189 = scmp.eq.s32.totalorder %s188, 0
      %s191 = sadd.s32 %s190, 1
      %s192 = scalar_select %p189, %s190, %s191
      %p195 = pneg %p189
      %p196 = scmp.eq.s32.totalorder %s18, 1
      %p197 = por %p195, %p196
      %p198 = scmp.ne.s32.totalorder %s190, %s193
      %p199 = scmp.eq.s32.totalorder %s18, 0
      %p200 = por %p198, %p199
      %p201 = scmp.ne.s32.totalorder %s190, %s193
      %p202 = scmp.eq.s32.totalorder %s23, 1
      %p203 = por %p201, %p202
      %p204 = scmp.ne.s32.totalorder %s193, %s194
      %p205 = scmp.eq.s32.totalorder %s23, 0
      %p206 = por %p204, %p205
      %p207 = scmp.ne.s32.totalorder %s193, %s194
      %p208 = scmp.eq.s32.totalorder %s24, 1
      %p209 = por %p207, %p208
      %p211 = scmp.ne.s32.totalorder %s194, %s210
      %p212 = scmp.eq.s32.totalorder %s24, 0
      %p213 = por %p211, %p212
      %p214 = scmp.le.s32.totalorder 1, %s18
      %p215 = scmp.lt.s32.totalorder %s18, 3
      %p216 = pnand %p214, %p215
      %p217 = pneg %p216
      // Predicated region
      $region9: #{tpu_custom_call.1} parent=5 // pred_check
        _
      $region10: #{tpu_custom_call.1} parent=5 // pred_check_branch
        %219 = sbr.rel (%p216) target = $region12
      $region11: #{tpu_custom_call.1} parent=5 // pred_region
        %s220 = ssub.s32 %s18, 1
        // Predicated region
        $region13: #{tpu_custom_call.1} parent=11 // pred_check
          %p221 = pneg %p117
        $region14: #{tpu_custom_call.1} parent=11 // pred_check_branch
          %223 = sbr.rel (%p221) target = $region16
        $region15: #{tpu_custom_call.1} parent=11 // pred_region
          %s225 = ssub.s32 2048, 2048
          %226 = vsyncadd [#allocation7], %s225
          %s227 = sshll.u32 [#allocation6], 4
          %s228 = int_to_ptr.vmem [resolvable:$true] %s227
          %233 = dma.hbm_to_vmem [thread:$0]  %s3, 2048, %s228, [#allocation7], 128, 128, 8
        $region16: #{tpu_custom_call.1} parent=11 // pred_fallthru
          _
        // Predicated region
        $region17: #{tpu_custom_call.1} parent=11 // pred_check
          %p234 = pneg %p138
        $region18: #{tpu_custom_call.1} parent=11 // pred_check_branch
          %236 = sbr.rel (%p234) target = $region20
        $region19: #{tpu_custom_call.1} parent=11 // pred_region
          _
        $region20: #{tpu_custom_call.1} parent=11 // pred_fallthru
          _
        // Predicated region
        $region21: #{tpu_custom_call.1} parent=11 // pred_check
          %p237 = pneg %p159
        $region22: #{tpu_custom_call.1} parent=11 // pred_check_branch
          %239 = sbr.rel (%p237) target = $region24
        $region23: #{tpu_custom_call.1} parent=11 // pred_region
          %s241 = ssub.s32 2048, 2048
          %242 = vsyncadd [#allocation10], %s241
          %s243 = sshll.u32 [#allocation9], 4
          %s244 = int_to_ptr.vmem [resolvable:$true] %s243
          %249 = dma.hbm_to_vmem [thread:$0]  %s5, 2048, %s244, [#allocation10], 128, 128, 8
        $region24: #{tpu_custom_call.1} parent=11 // pred_fallthru
          _
        // Predicated region
        $region25: #{tpu_custom_call.1} parent=11 // pred_check
          %p250 = pneg %p180
        $region26: #{tpu_custom_call.1} parent=11 // pred_check_branch
          %252 = sbr.rel (%p250) target = $region28
        $region27: #{tpu_custom_call.1} parent=11 // pred_region
          _
        $region28: #{tpu_custom_call.1} parent=11 // pred_fallthru
          _
      $region12: #{tpu_custom_call.1} parent=5 // pred_fallthru
        _
      %p253 = scmp.lt.s32.totalorder %s18, 2
      // Predicated region
      $region29: #{tpu_custom_call.1} parent=5 // pred_check
        %p254 = pneg %p253
      $region30: #{tpu_custom_call.1} parent=5 // pred_check_branch
        %256 = sbr.rel (%p254) target = $region32
      $region31: #{tpu_custom_call.1} parent=5 // pred_region
        // Predicated region
        $region33: #{tpu_custom_call.1} parent=31 // pred_check
          %p257 = pneg %p38
        $region34: #{tpu_custom_call.1} parent=31 // pred_check_branch
          %259 = sbr.rel (%p257) target = $region36
        $region35: #{tpu_custom_call.1} parent=31 // pred_region
          %s260 = smul.u32 2, %s18
          %p261 = scmp.lt.s32.totalorder %s260, 3
          %s262 = scalar_select %p261, %s260, 3
          %s263 = smul.addr %s262, 8
          %s264 = scalar_lea.vmem %s0, %s263
          %s265 = smul.u32 2, %s18
        $region36: #{tpu_custom_call.1} parent=31 // pred_fallthru
          _
        // Predicated region
        $region37: #{tpu_custom_call.1} parent=31 // pred_check
          %p266 = pneg %p64
        $region38: #{tpu_custom_call.1} parent=31 // pred_check_branch
          %268 = sbr.rel (%p266) target = $region40
        $region39: #{tpu_custom_call.1} parent=31 // pred_region
          %s269 = smul.u32 2, %s18
          %p270 = scmp.lt.s32.totalorder %s269, 3
          %s271 = scalar_select %p270, %s269, 3
          %s272 = smul.addr %s271, 8
          %s273 = scalar_lea.vmem %s1, %s272
          %s274 = smul.u32 2, %s18
        $region40: #{tpu_custom_call.1} parent=31 // pred_fallthru
          _
        // Predicated region
        $region41: #{tpu_custom_call.1} parent=31 // pred_check
          %p275 = pneg %p90
        $region42: #{tpu_custom_call.1} parent=31 // pred_check_branch
          %277 = sbr.rel (%p275) target = $region44
        $region43: #{tpu_custom_call.1} parent=31 // pred_region
          %s278 = smul.u32 2, %s18
          %p279 = scmp.lt.s32.totalorder %s278, 3
          %s280 = scalar_select %p279, %s278, 3
          %s281 = smul.addr %s280, 8
          %s282 = scalar_lea.vmem %s2, %s281
          %s283 = smul.u32 2, %s18
        $region44: #{tpu_custom_call.1} parent=31 // pred_fallthru
          _
      $region32: #{tpu_custom_call.1} parent=5 // pred_fallthru
        _
      %p284 = scmp.le.s32.totalorder 1, %s18
      %p285 = scmp.lt.s32.totalorder %s18, 3
      %p286 = pnand %p284, %p285
      %p287 = pneg %p286
      // Predicated region
      $region45: #{tpu_custom_call.1} parent=5 // pred_check
        _
      $region46: #{tpu_custom_call.1} parent=5 // pred_check_branch
        %289 = sbr.rel (%p286) target = $region48
      $region47: #{tpu_custom_call.1} parent=5 // pred_region
        %s290 = ssub.s32 %s18, 1
        // Predicated region
        $region49: #{tpu_custom_call.1} parent=47 // pred_check
          %p291 = pneg %p117
        $region50: #{tpu_custom_call.1} parent=47 // pred_check_branch
          %293 = sbr.rel (%p291) target = $region52
        $region51: #{tpu_custom_call.1} parent=47 // pred_region
          %294 = dma.done [#allocation7], 2048
        $region52: #{tpu_custom_call.1} parent=47 // pred_fallthru
          _
        // Predicated region
        $region53: #{tpu_custom_call.1} parent=47 // pred_check
          %p295 = pneg %p159
        $region54: #{tpu_custom_call.1} parent=47 // pred_check_branch
          %297 = sbr.rel (%p295) target = $region56
        $region55: #{tpu_custom_call.1} parent=47 // pred_region
          %298 = dma.done [#allocation10], 2048
        $region56: #{tpu_custom_call.1} parent=47 // pred_fallthru
          _
        %s299 = smul.u32 2, %s23
        %p300 = scmp.lt.s32.totalorder %s299, 3
        %s301 = scalar_select %p300, %s299, 3
        %s302 = smul.addr %s301, 8
        %s303 = scalar_lea.vmem %s0, %s302
        %p304 = pneg %p44
        %p305 = pneg %p41
        %s306 = smul.u32 2, %s23
        %p307 = scmp.lt.s32.totalorder %s306, 3
        %s308 = scalar_select %p307, %s306, 3
        %s309 = smul.addr %s308, 8
        %s310 = scalar_lea.vmem %s1, %s309
        %p311 = pneg %p70
        %p312 = pneg %p67
        %s313 = smul.u32 2, %s23
        %p314 = scmp.lt.s32.totalorder %s313, 3
        %s315 = scalar_select %p314, %s313, 3
        %s316 = smul.addr %s315, 8
        %s317 = scalar_lea.vmem %s2, %s316
        %p318 = pneg %p96
        %p319 = pneg %p93
        %p320 = pneg %p117
        %p321 = pneg %p114
        %p322 = pneg %p138
        %p323 = pneg %p135
        %p324 = pneg %p159
        %p325 = pneg %p156
        %p326 = pneg %p180
        %p327 = pneg %p177
        %p328 = pneg %p206
        %p329 = pneg %p203
        %s330 = sand.u32 %s193, 1
        %s331 = scalar_lea.sflag [#allocation8], %s330
        %s332 = sand.u32 %s193, 1
        %s333 = smul.addr %s332, 16
        %s334 = scalar_lea.vmem [#allocation11], %s333
        %s335 = smul.u32 2, %s23
        %p336 = scmp.lt.s32.totalorder %s335, 3
        %s337 = scalar_select %p336, %s335, 3
        %s338 = smul.addr %s337, 8
        %s339 = scalar_lea.vmem %s0, %s338
        %s340 = smul.u32 2, %s23
        %s341 = smul.u32 2, %s23
        %p342 = scmp.lt.s32.totalorder %s341, 3
        %s343 = scalar_select %p342, %s341, 3
        %s344 = smul.addr %s343, 8
        %s345 = scalar_lea.vmem %s1, %s344
        %s346 = smul.u32 2, %s23
        %s347 = smul.u32 2, %s23
        %p348 = scmp.lt.s32.totalorder %s347, 3
        %s349 = scalar_select %p348, %s347, 3
        %s350 = smul.addr %s349, 8
        %s351 = scalar_lea.vmem %s2, %s350
        %s352 = smul.u32 2, %s23
        %s353 = smul.u32 2, %s23
        %v354 = vld [vmem:[%s339] sm:$0xff]
        %v355 = vld [vmem:[%s339 + $0x8] sm:$0xff]
        %v356 = vld [vmem:[#allocation6] sm:$0xff]
        %v357 = vld [vmem:[#allocation6 + $0x8] sm:$0xff]
        %v358 = vld [vmem:[#allocation6 + $0x10] sm:$0xff]
        %v359 = vld [vmem:[#allocation6 + $0x18] sm:$0xff]
        %v360 = vld [vmem:[#allocation6 + $0x20] sm:$0xff]
        %v361 = vld [vmem:[#allocation6 + $0x28] sm:$0xff]
        %v362 = vld [vmem:[#allocation6 + $0x30] sm:$0xff]
        %v363 = vld [vmem:[#allocation6 + $0x38] sm:$0xff]
        %v364 = vld [vmem:[#allocation6 + $0x40] sm:$0xff]
        %v365 = vld [vmem:[#allocation6 + $0x48] sm:$0xff]
        %v366 = vld [vmem:[#allocation6 + $0x50] sm:$0xff]
        %v367 = vld [vmem:[#allocation6 + $0x58] sm:$0xff]
        %v368 = vld [vmem:[#allocation6 + $0x60] sm:$0xff]
        %v369 = vld [vmem:[#allocation6 + $0x68] sm:$0xff]
        %v370 = vld [vmem:[#allocation6 + $0x70] sm:$0xff]
        %v371 = vld [vmem:[#allocation6 + $0x78] sm:$0xff]
        %v372 = vld [vmem:[#allocation9] sm:$0xff]
        %v373 = vld [vmem:[#allocation9 + $0x8] sm:$0xff]
        %v374 = vld [vmem:[#allocation9 + $0x10] sm:$0xff]
        %v375 = vld [vmem:[#allocation9 + $0x18] sm:$0xff]
        %v376 = vld [vmem:[#allocation9 + $0x20] sm:$0xff]
        %v377 = vld [vmem:[#allocation9 + $0x28] sm:$0xff]
        %v378 = vld [vmem:[#allocation9 + $0x30] sm:$0xff]
        %v379 = vld [vmem:[#allocation9 + $0x38] sm:$0xff]
        %v380 = vld [vmem:[#allocation9 + $0x40] sm:$0xff]
        %v381 = vld [vmem:[#allocation9 + $0x48] sm:$0xff]
        %v382 = vld [vmem:[#allocation9 + $0x50] sm:$0xff]
        %v383 = vld [vmem:[#allocation9 + $0x58] sm:$0xff]
        %v384 = vld [vmem:[#allocation9 + $0x60] sm:$0xff]
        %v385 = vld [vmem:[#allocation9 + $0x68] sm:$0xff]
        %v386 = vld [vmem:[#allocation9 + $0x70] sm:$0xff]
        %v387 = vld [vmem:[#allocation9 + $0x78] sm:$0xff]
        %v388 = vld [vmem:[%s4] sm:$0x1]
        %v390 = vlaneseq
        %v391 = vshrl.u32 %v390, 7
        %v392 = vsub.s32 0, %v391
        %v393 = vrot.slane %v388, %v392
        %395 = vmatprep.subr.mxu0 0.0
        %396 = vmatpush1.msra.mxu0 %v356
        %397 = vmatprep.subr.mxu0 0.0
        %398 = vmatpush1.msra.mxu0 %v357
        %399 = vmatprep.subr.mxu0 0.0
        %400 = vmatpush1.msra.mxu0 %v358
        %401 = vmatprep.subr.mxu0 0.0
        %402 = vmatpush1.msra.mxu0 %v359
        %403 = vmatprep.subr.mxu0 0.0
        %404 = vmatpush1.msra.mxu0 %v360
        %405 = vmatprep.subr.mxu0 0.0
        %406 = vmatpush1.msra.mxu0 %v361
        %407 = vmatprep.subr.mxu0 0.0
        %408 = vmatpush1.msra.mxu0 %v362
        %409 = vmatprep.subr.mxu0 0.0
        %410 = vmatpush1.msra.mxu0 %v363
        %411 = vmatprep.subr.mxu0 0.0
        %412 = vmatpush1.msra.mxu0 %v364
        %413 = vmatprep.subr.mxu0 0.0
        %414 = vmatpush1.msra.mxu0 %v365
        %415 = vmatprep.subr.mxu0 0.0
        %416 = vmatpush1.msra.mxu0 %v366
        %417 = vmatprep.subr.mxu0 0.0
        %418 = vmatpush1.msra.mxu0 %v367
        %419 = vmatprep.subr.mxu0 0.0
        %420 = vmatpush1.msra.mxu0 %v368
        %421 = vmatprep.subr.mxu0 0.0
        %422 = vmatpush1.msra.mxu0 %v369
        %423 = vmatprep.subr.mxu0 0.0
        %424 = vmatpush1.msra.mxu0 %v370
        %425 = vmatprep.subr.mxu0 0.0
        %426 = vmatpush1.msra.mxu0 %v371
        %427 = vmatprep.subr.mxu0 0.0
        %428 = vmatpush1.msra.mxu0 0.0
        %429 = vmatprep.subr.mxu0 0.0
        %430 = vmatpush1.msra.mxu0 0.0
        %431 = vmatprep.subr.mxu0 0.0
        %432 = vmatpush1.msra.mxu0 0.0
        %433 = vmatprep.subr.mxu0 0.0
        %434 = vmatpush1.msra.mxu0 0.0
        %435 = vmatprep.subr.mxu0 0.0
        %436 = vmatpush1.msra.mxu0 0.0
        %437 = vmatprep.subr.mxu0 0.0
        %438 = vmatpush1.msra.mxu0 0.0
        %439 = vmatprep.subr.mxu0 0.0
        %440 = vmatpush1.msra.mxu0 0.0
        %441 = vmatprep.subr.mxu0 0.0
        %442 = vmatpush1.msra.mxu0 0.0
        %443 = vmatprep.subr.mxu0 0.0
        %444 = vmatpush1.msra.mxu0 0.0
        %445 = vmatprep.subr.mxu0 0.0
        %446 = vmatpush1.msra.mxu0 0.0
        %447 = vmatprep.subr.mxu0 0.0
        %448 = vmatpush1.msra.mxu0 0.0
        %449 = vmatprep.subr.mxu0 0.0
        %450 = vmatpush1.msra.mxu0 0.0
        %451 = vmatprep.subr.mxu0 0.0
        %452 = vmatpush1.msra.mxu0 0.0
        %453 = vmatprep.subr.mxu0 0.0
        %454 = vmatpush1.msra.mxu0 0.0
        %455 = vmatprep.subr.mxu0 0.0
        %456 = vmatpush1.msra.mxu0 0.0
        %457 = vmatprep.subr.mxu0 0.0
        %458 = vmatpush1.msra.mxu0 0.0
        %459 = vmatprep.mubr.f32.mxu0 0.0
        %460 = vmatmul.mubr.f32.gmra.mrb[0].mxu0 %v354
        %v461 = vpop.f32.mrb[0].mxu0
        %v462 = vadd.f32 %v393, %v461
        %v463 = vpop.f32.mrb[0].mxu0
        %464 = vmatprep.mubr.f32.mxu0 0.0
        %465 = vmatmul.mubr.f32.gmra.mrb[0].mxu0 %v355
        %v466 = vpop.f32.mrb[0].mxu0
        %v467 = vadd.f32 %v393, %v466
        %v468 = vpop.f32.mrb[0].mxu0
        %469 = vdwg.mxu0
        %v470 = vld [vmem:[%s6] sm:$0x1]
        %v472 = vlaneseq
        %v473 = vshrl.u32 %v472, 7
        %v474 = vsub.s32 0, %v473
        %v475 = vrot.slane %v470, %v474
        %477 = vmatprep.subr.mxu0 0.0
        %478 = vmatpush1.msra.mxu0 %v372
        %479 = vmatprep.subr.mxu0 0.0
        %480 = vmatpush1.msra.mxu0 %v373
        %481 = vmatprep.subr.mxu0 0.0
        %482 = vmatpush1.msra.mxu0 %v374
        %483 = vmatprep.subr.mxu0 0.0
        %484 = vmatpush1.msra.mxu0 %v375
        %485 = vmatprep.subr.mxu0 0.0
        %486 = vmatpush1.msra.mxu0 %v376
        %487 = vmatprep.subr.mxu0 0.0
        %488 = vmatpush1.msra.mxu0 %v377
        %489 = vmatprep.subr.mxu0 0.0
        %490 = vmatpush1.msra.mxu0 %v378
        %491 = vmatprep.subr.mxu0 0.0
        %492 = vmatpush1.msra.mxu0 %v379
        %493 = vmatprep.subr.mxu0 0.0
        %494 = vmatpush1.msra.mxu0 %v380
        %495 = vmatprep.subr.mxu0 0.0
        %496 = vmatpush1.msra.mxu0 %v381
        %497 = vmatprep.subr.mxu0 0.0
        %498 = vmatpush1.msra.mxu0 %v382
        %499 = vmatprep.subr.mxu0 0.0
        %500 = vmatpush1.msra.mxu0 %v383
        %501 = vmatprep.subr.mxu0 0.0
        %502 = vmatpush1.msra.mxu0 %v384
        %503 = vmatprep.subr.mxu0 0.0
        %504 = vmatpush1.msra.mxu0 %v385
        %505 = vmatprep.subr.mxu0 0.0
        %506 = vmatpush1.msra.mxu0 %v386
        %507 = vmatprep.subr.mxu0 0.0
        %508 = vmatpush1.msra.mxu0 %v387
        %509 = vmatprep.subr.mxu0 0.0
        %510 = vmatpush1.msra.mxu0 0.0
        %511 = vmatprep.subr.mxu0 0.0
        %512 = vmatpush1.msra.mxu0 0.0
        %513 = vmatprep.subr.mxu0 0.0
        %514 = vmatpush1.msra.mxu0 0.0
        %515 = vmatprep.subr.mxu0 0.0
        %516 = vmatpush1.msra.mxu0 0.0
        %517 = vmatprep.subr.mxu0 0.0
        %518 = vmatpush1.msra.mxu0 0.0
        %519 = vmatprep.subr.mxu0 0.0
        %520 = vmatpush1.msra.mxu0 0.0
        %521 = vmatprep.subr.mxu0 0.0
        %522 = vmatpush1.msra.mxu0 0.0
        %523 = vmatprep.subr.mxu0 0.0
        %524 = vmatpush1.msra.mxu0 0.0
        %525 = vmatprep.subr.mxu0 0.0
        %526 = vmatpush1.msra.mxu0 0.0
        %527 = vmatprep.subr.mxu0 0.0
        %528 = vmatpush1.msra.mxu0 0.0
        %529 = vmatprep.subr.mxu0 0.0
        %530 = vmatpush1.msra.mxu0 0.0
        %531 = vmatprep.subr.mxu0 0.0
        %532 = vmatpush1.msra.mxu0 0.0
        %533 = vmatprep.subr.mxu0 0.0
        %534 = vmatpush1.msra.mxu0 0.0
        %535 = vmatprep.subr.mxu0 0.0
        %536 = vmatpush1.msra.mxu0 0.0
        %537 = vmatprep.subr.mxu0 0.0
        %538 = vmatpush1.msra.mxu0 0.0
        %539 = vmatprep.subr.mxu0 0.0
        %540 = vmatpush1.msra.mxu0 0.0
        %541 = vmatprep.mubr.f32.mxu0 0.0
        %542 = vmatmul.mubr.f32.gmra.mrb[0].mxu0 %v354
        %v543 = vpop.f32.mrb[0].mxu0
        %v544 = vadd.f32 %v475, %v543
        %v545 = vpop.f32.mrb[0].mxu0
        %546 = vmatprep.mubr.f32.mxu0 0.0
        %547 = vmatmul.mubr.f32.gmra.mrb[0].mxu0 %v355
        %v548 = vpop.f32.mrb[0].mxu0
        %v549 = vadd.f32 %v475, %v548
        %v550 = vpop.f32.mrb[0].mxu0
        %551 = vdwg.mxu0
        %552 = vst [vmem:[#allocation2] sm:$0xff] %v462
        %553 = vst [vmem:[#allocation2 + $0x8] sm:$0xff] %v467
        %554 = vst [vmem:[#allocation3] sm:$0xff] %v544
        %555 = vst [vmem:[#allocation3 + $0x8] sm:$0xff] %v549
        %v556 = vld [vmem:[%s345] sm:$0xff]
        %v557 = vld [vmem:[%s345 + $0x8] sm:$0xff]
        %559 = vset.pattern.permute.xlu0 0
        %560 = vperm.xlu0 %559, %v556
        %v561 = vpop.permute.xlu0 %560
        %564 = vset.pattern.permute.xlu0 0
        %565 = vperm.xlu0 %564, %v557
        %v566 = vpop.permute.xlu0 %565
        %v568 = vmul.f32 %v354, %v561
        %v569 = vmul.f32 %v355, %v566
        %570 = vst [vmem:[#allocation4] sm:$0xff] %v568
        %571 = vst [vmem:[#allocation4 + $0x8] sm:$0xff] %v569
        %572 = vst [vmem:[#allocation5] sm:$0xff] 0.0
        %573 = vst [vmem:[#allocation5 + $0x8] sm:$0xff] 0.0
        %v574 = vld [vmem:[#allocation3] sm:$0xff]
        %v575 = vld [vmem:[#allocation3 + $0x8] sm:$0xff]
        %v576 = vld [vmem:[#allocation4] sm:$0xff]
        %v577 = vld [vmem:[#allocation4 + $0x8] sm:$0xff]
        %v578 = vld [vmem:[#allocation2] sm:$0xff]
        %v579 = vld [vmem:[#allocation2 + $0x8] sm:$0xff]
        %v580 = vld [vmem:[#allocation5] sm:$0xff]
        %v581 = vld [vmem:[#allocation5 + $0x8] sm:$0xff]
        %v582 = vlaneseq
        %v583 = vshrl.u32 %v582, 7
        %v584 = vsub.s32 0, %v583
        %v585 = vrot.slane %v574, %v584
        %v586 = vlaneseq
        %v587 = vshrl.u32 %v586, 7
        %v588 = vsub.s32 0, %v587
        %v589 = vrot.slane %v575, %v588
        %v590 = vadd.f32 %v578, %v585
        %v591 = vadd.f32 %v579, %v589
        %v592 = vxor.u32 %v590, 2147483648
        %v593 = vxor.u32 %v591, 2147483648
        %v594 = vmul.f32 %v592, 1.442695
        %v595 = vpow.pop %v594
        %v596 = vmul.f32 %v593, 1.442695
        %v597 = vpow.pop %v596
        %v598 = vadd.f32 %v595, 1.0
        %v599 = vadd.f32 %v597, 1.0
        %v600 = vrcp.pop %v598
        %v601 = vmul.f32 1.0, %v600
        %v602 = vrcp.pop %v599
        %v603 = vmul.f32 1.0, %v602
        %v604 = vlaneseq
        %v605 = vshrl.u32 %v604, 7
        %v606 = vsub.s32 0, %v605
        %v607 = vrot.slane %v576, %v606
        %v608 = vlaneseq
        %v609 = vshrl.u32 %v608, 7
        %v610 = vsub.s32 0, %v609
        %v611 = vrot.slane %v577, %v610
        %v612 = vmul.f32 %v601, %v607
        %v613 = vmul.f32 %v603, %v611
        %v614 = vadd.f32 %v580, %v612
        %v615 = vadd.f32 %v581, %v613
        %v616 = vlaneseq
        %v617 = vshrl.u32 %v616, 7
        %v618 = vsub.s32 1, %v617
        %v619 = vrot.slane %v574, %v618
        %v620 = vlaneseq
        %v621 = vshrl.u32 %v620, 7
        %v622 = vsub.s32 1, %v621
        %v623 = vrot.slane %v575, %v622
        %v624 = vadd.f32 %v578, %v619
        %v625 = vadd.f32 %v579, %v623
        %v626 = vxor.u32 %v624, 2147483648
        %v627 = vxor.u32 %v625, 2147483648
        %v628 = vmul.f32 %v626, 1.442695
        %v629 = vpow.pop %v628
        %v630 = vmul.f32 %v627, 1.442695
        %v631 = vpow.pop %v630
        %v632 = vadd.f32 %v629, 1.0
        %v633 = vadd.f32 %v631, 1.0
        %v634 = vrcp.pop %v632
        %v635 = vmul.f32 1.0, %v634
        %v636 = vrcp.pop %v633
        %v637 = vmul.f32 1.0, %v636
        %v638 = vlaneseq
        %v639 = vshrl.u32 %v638, 7
        %v640 = vsub.s32 1, %v639
        %v641 = vrot.slane %v576, %v640
        %v642 = vlaneseq
        %v643 = vshrl.u32 %v642, 7
        %v644 = vsub.s32 1, %v643
        %v645 = vrot.slane %v577, %v644
        %v646 = vmul.f32 %v635, %v641
        %v647 = vmul.f32 %v637, %v645
        %v648 = vadd.f32 %v614, %v646
        %v649 = vadd.f32 %v615, %v647
        %v650 = vlaneseq
        %v651 = vshrl.u32 %v650, 7
        %v652 = vsub.s32 2, %v651
        %v653 = vrot.slane %v574, %v652
        %v654 = vlaneseq
        %v655 = vshrl.u32 %v654, 7
        %v656 = vsub.s32 2, %v655
        %v657 = vrot.slane %v575, %v656
        %v658 = vadd.f32 %v578, %v653
        %v659 = vadd.f32 %v579, %v657
        %v660 = vxor.u32 %v658, 2147483648
        %v661 = vxor.u32 %v659, 2147483648
        %v662 = vmul.f32 %v660, 1.442695
        %v663 = vpow.pop %v662
        %v664 = vmul.f32 %v661, 1.442695
        %v665 = vpow.pop %v664
        %v666 = vadd.f32 %v663, 1.0
        %v667 = vadd.f32 %v665, 1.0
        %v668 = vrcp.pop %v666
        %v669 = vmul.f32 1.0, %v668
        %v670 = vrcp.pop %v667
        %v671 = vmul.f32 1.0, %v670
        %v672 = vlaneseq
        %v673 = vshrl.u32 %v672, 7
        %v674 = vsub.s32 2, %v673
        %v675 = vrot.slane %v576, %v674
        %v676 = vlaneseq
        %v677 = vshrl.u32 %v676, 7
        %v678 = vsub.s32 2, %v677
        %v679 = vrot.slane %v577, %v678
        %v680 = vmul.f32 %v669, %v675
        %v681 = vmul.f32 %v671, %v679
        %v682 = vadd.f32 %v648, %v680
        %v683 = vadd.f32 %v649, %v681
        %v684 = vlaneseq
        %v685 = vshrl.u32 %v684, 7
        %v686 = vsub.s32 3, %v685
        %v687 = vrot.slane %v574, %v686
        %v688 = vlaneseq
        %v689 = vshrl.u32 %v688, 7
        %v690 = vsub.s32 3, %v689
        %v691 = vrot.slane %v575, %v690
        %v692 = vadd.f32 %v578, %v687
        %v693 = vadd.f32 %v579, %v691
        %v694 = vxor.u32 %v692, 2147483648
        %v695 = vxor.u32 %v693, 2147483648
        %v696 = vmul.f32 %v694, 1.442695
        %v697 = vpow.pop %v696
        %v698 = vmul.f32 %v695, 1.442695
        %v699 = vpow.pop %v698
        %v700 = vadd.f32 %v697, 1.0
        %v701 = vadd.f32 %v699, 1.0
        %v702 = vrcp.pop %v700
        %v703 = vmul.f32 1.0, %v702
        %v704 = vrcp.pop %v701
        %v705 = vmul.f32 1.0, %v704
        %v706 = vlaneseq
        %v707 = vshrl.u32 %v706, 7
        %v708 = vsub.s32 3, %v707
        %v709 = vrot.slane %v576, %v708
        %v710 = vlaneseq
        %v711 = vshrl.u32 %v710, 7
        %v712 = vsub.s32 3, %v711
        %v713 = vrot.slane %v577, %v712
        %v714 = vmul.f32 %v703, %v709
        %v715 = vmul.f32 %v705, %v713
        %v716 = vadd.f32 %v682, %v714
        %v717 = vadd.f32 %v683, %v715
        %v718 = vlaneseq
        %v719 = vshrl.u32 %v718, 7
        %v720 = vsub.s32 4, %v719
        %v721 = vrot.slane %v574, %v720
        %v722 = vlaneseq
        %v723 = vshrl.u32 %v722, 7
        %v724 = vsub.s32 4, %v723
        %v725 = vrot.slane %v575, %v724
        %v726 = vadd.f32 %v578, %v721
        %v727 = vadd.f32 %v579, %v725
        %v728 = vxor.u32 %v726, 2147483648
        %v729 = vxor.u32 %v727, 2147483648
        %v730 = vmul.f32 %v728, 1.442695
        %v731 = vpow.pop %v730
        %v732 = vmul.f32 %v729, 1.442695
        %v733 = vpow.pop %v732
        %v734 = vadd.f32 %v731, 1.0
        %v735 = vadd.f32 %v733, 1.0
        %v736 = vrcp.pop %v734
        %v737 = vmul.f32 1.0, %v736
        %v738 = vrcp.pop %v735
        %v739 = vmul.f32 1.0, %v738
        %v740 = vlaneseq
        %v741 = vshrl.u32 %v740, 7
        %v742 = vsub.s32 4, %v741
        %v743 = vrot.slane %v576, %v742
        %v744 = vlaneseq
        %v745 = vshrl.u32 %v744, 7
        %v746 = vsub.s32 4, %v745
        %v747 = vrot.slane %v577, %v746
        %v748 = vmul.f32 %v737, %v743
        %v749 = vmul.f32 %v739, %v747
        %v750 = vadd.f32 %v716, %v748
        %v751 = vadd.f32 %v717, %v749
        %v752 = vlaneseq
        %v753 = vshrl.u32 %v752, 7
        %v754 = vsub.s32 5, %v753
        %v755 = vrot.slane %v574, %v754
        %v756 = vlaneseq
        %v757 = vshrl.u32 %v756, 7
        %v758 = vsub.s32 5, %v757
        %v759 = vrot.slane %v575, %v758
        %v760 = vadd.f32 %v578, %v755
        %v761 = vadd.f32 %v579, %v759
        %v762 = vxor.u32 %v760, 2147483648
        %v763 = vxor.u32 %v761, 2147483648
        %v764 = vmul.f32 %v762, 1.442695
        %v765 = vpow.pop %v764
        %v766 = vmul.f32 %v763, 1.442695
        %v767 = vpow.pop %v766
        %v768 = vadd.f32 %v765, 1.0
        %v769 = vadd.f32 %v767, 1.0
        %v770 = vrcp.pop %v768
        %v771 = vmul.f32 1.0, %v770
        %v772 = vrcp.pop %v769
        %v773 = vmul.f32 1.0, %v772
        %v774 = vlaneseq
        %v775 = vshrl.u32 %v774, 7
        %v776 = vsub.s32 5, %v775
        %v777 = vrot.slane %v576, %v776
        %v778 = vlaneseq
        %v779 = vshrl.u32 %v778, 7
        %v780 = vsub.s32 5, %v779
        %v781 = vrot.slane %v577, %v780
        %v782 = vmul.f32 %v771, %v777
        %v783 = vmul.f32 %v773, %v781
        %v784 = vadd.f32 %v750, %v782
        %v785 = vadd.f32 %v751, %v783
        %v786 = vlaneseq
        %v787 = vshrl.u32 %v786, 7
        %v788 = vsub.s32 6, %v787
        %v789 = vrot.slane %v574, %v788
        %v790 = vlaneseq
        %v791 = vshrl.u32 %v790, 7
        %v792 = vsub.s32 6, %v791
        %v793 = vrot.slane %v575, %v792
        %v794 = vadd.f32 %v578, %v789
        %v795 = vadd.f32 %v579, %v793
        %v796 = vxor.u32 %v794, 2147483648
        %v797 = vxor.u32 %v795, 2147483648
        %v798 = vmul.f32 %v796, 1.442695
        %v799 = vpow.pop %v798
        %v800 = vmul.f32 %v797, 1.442695
        %v801 = vpow.pop %v800
        %v802 = vadd.f32 %v799, 1.0
        %v803 = vadd.f32 %v801, 1.0
        %v804 = vrcp.pop %v802
        %v805 = vmul.f32 1.0, %v804
        %v806 = vrcp.pop %v803
        %v807 = vmul.f32 1.0, %v806
        %v808 = vlaneseq
        %v809 = vshrl.u32 %v808, 7
        %v810 = vsub.s32 6, %v809
        %v811 = vrot.slane %v576, %v810
        %v812 = vlaneseq
        %v813 = vshrl.u32 %v812, 7
        %v814 = vsub.s32 6, %v813
        %v815 = vrot.slane %v577, %v814
        %v816 = vmul.f32 %v805, %v811
        %v817 = vmul.f32 %v807, %v815
        %v818 = vadd.f32 %v784, %v816
        %v819 = vadd.f32 %v785, %v817
        %v820 = vlaneseq
        %v821 = vshrl.u32 %v820, 7
        %v822 = vsub.s32 7, %v821
        %v823 = vrot.slane %v574, %v822
        %v824 = vlaneseq
        %v825 = vshrl.u32 %v824, 7
        %v826 = vsub.s32 7, %v825
        %v827 = vrot.slane %v575, %v826
        %v828 = vadd.f32 %v578, %v823
        %v829 = vadd.f32 %v579, %v827
        %v830 = vxor.u32 %v828, 2147483648
        %v831 = vxor.u32 %v829, 2147483648
        %v832 = vmul.f32 %v830, 1.442695
        %v833 = vpow.pop %v832
        %v834 = vmul.f32 %v831, 1.442695
        %v835 = vpow.pop %v834
        %v836 = vadd.f32 %v833, 1.0
        %v837 = vadd.f32 %v835, 1.0
        %v838 = vrcp.pop %v836
        %v839 = vmul.f32 1.0, %v838
        %v840 = vrcp.pop %v837
        %v841 = vmul.f32 1.0, %v840
        %v842 = vlaneseq
        %v843 = vshrl.u32 %v842, 7
        %v844 = vsub.s32 7, %v843
        %v845 = vrot.slane %v576, %v844
        %v846 = vlaneseq
        %v847 = vshrl.u32 %v846, 7
        %v848 = vsub.s32 7, %v847
        %v849 = vrot.slane %v577, %v848
        %v850 = vmul.f32 %v839, %v845
        %v851 = vmul.f32 %v841, %v849
        %v852 = vadd.f32 %v818, %v850
        %v853 = vadd.f32 %v819, %v851
        %854 = vst [vmem:[#allocation5] sm:$0xff] %v852
        %855 = vst [vmem:[#allocation5 + $0x8] sm:$0xff] %v853
        %v856 = vld [vmem:[#allocation5] sm:$0xff]
        %v857 = vld [vmem:[#allocation5 + $0x8] sm:$0xff]
        %v858 = vld [vmem:[%s351] sm:$0xff]
        %v859 = vld [vmem:[%s351 + $0x8] sm:$0xff]
        %861 = vset.pattern.permute.xlu0 0
        %862 = vperm.xlu0 %861, %v858
        %v863 = vpop.permute.xlu0 %862
        %866 = vset.pattern.permute.xlu0 0
        %867 = vperm.xlu0 %866, %v859
        %v868 = vpop.permute.xlu0 %867
        %v870 = vmul.f32 %v856, %v863
        %v871 = vmul.f32 %v857, %v868
        %v872 = vtanh.pop %v870
        %v873 = vtanh.pop %v871
        %874 = vst [vmem:[%s334] sm:$0xff] %v872
        %875 = vst [vmem:[%s334 + $0x8] sm:$0xff] %v873
        %s876 = sand.u32 %s193, 1
        %s877 = scalar_lea.sflag [#allocation8], %s876
        %s878 = sand.u32 %s193, 1
        %s879 = smul.addr %s878, 16
        %s880 = scalar_lea.vmem [#allocation11], %s879
        // Predicated region
        $region57: #{tpu_custom_call.1} parent=47 // pred_check
          %p881 = pneg %p203
        $region58: #{tpu_custom_call.1} parent=47 // pred_check_branch
          %883 = sbr.rel (%p881) target = $region60
        $region59: #{tpu_custom_call.1} parent=47 // pred_region
          %s884 = smul.u32 2, %s23
          %s886 = ssub.s32 256, 256
          %887 = vsyncadd %s877, %s886
          %s888 = smul.addr %s884, 128
          %s889 = scalar_lea.hbm %s7, %s888
          %s890 = sshll.u32 %s880, 4
          %s891 = int_to_ptr.vmem [resolvable:$true] %s890
          %896 = dma.vmem_to_hbm [thread:$0]  %s891, 256, %s889, %s877, 128, 128, 8
        $region60: #{tpu_custom_call.1} parent=47 // pred_fallthru
          _
      $region48: #{tpu_custom_call.1} parent=5 // pred_fallthru
        _
      %p897 = scmp.le.s32.totalorder 2, %s18
      // Predicated region
      $region61: #{tpu_custom_call.1} parent=5 // pred_check
        %p898 = pneg %p897
      $region62: #{tpu_custom_call.1} parent=5 // pred_check_branch
        %900 = sbr.rel (%p898) target = $region64
      $region63: #{tpu_custom_call.1} parent=5 // pred_region
        %s901 = ssub.s32 %s18, 2
        // Predicated region
        $region65: #{tpu_custom_call.1} parent=63 // pred_check
          %p902 = pneg %p209
        $region66: #{tpu_custom_call.1} parent=63 // pred_check_branch
          %904 = sbr.rel (%p902) target = $region68
        $region67: #{tpu_custom_call.1} parent=63 // pred_region
          %s905 = sand.u32 %s194, 1
          %s906 = scalar_lea.sflag [#allocation8], %s905
          %s907 = sand.u32 %s194, 1
          %s908 = smul.addr %s907, 16
          %s909 = scalar_lea.vmem [#allocation11], %s908
          %910 = dma.done %s906, 256
        $region68: #{tpu_custom_call.1} parent=63 // pred_fallthru
          _
      $region64: #{tpu_custom_call.1} parent=5 // pred_fallthru
        _
    $region6: #{tpu_custom_call.1} parent=1 // loop_footer
      %s22 = sadd.s32 1, %s18
    $region7: #{tpu_custom_call.1} parent=1 // loop_footer_branch
      %17 = sbr.rel target = $region3
    $region8: #{tpu_custom_call.1} parent=1 // loop_exit
      _
    %911 = vsyncpa [#allocation7], 1
    %s912 = scalar_lea.sflag [#allocation7], 1
    %913 = vsyncpa %s912, 1
    %914 = vsyncpa [#allocation10], 1
    %915 = vsyncpa [#allocation8], 1
    %s916 = scalar_lea.sflag [#allocation8], 1
    %917 = vsyncpa %s916, 1

// kernel: tpu_custom_call.1
$region0: #{tpu_custom_call.1}
  #allocation0 [shape = 'u32[]', space=smem, size = 0x4, offset = 0x4, fixed_abs, tag = 'smem constant byte address 0x4 - core index']
  #allocation1 [shape = 'u32[144,128]{1,0:T(1,128)}', space=vmem, size = 0x12000, scoped, tag = 'internal scratch']
  #allocation2 [shape = 'f32[2,8,128]{2,1,0:T(8,128)}', space=vmem, size = 0x2000, scoped, tag = 'scratch operand']
  #allocation3 [shape = 'f32[2,8,128]{2,1,0:T(8,128)}', space=vmem, size = 0x2000, scoped, tag = 'scratch operand']
  #allocation4 [shape = 'f32[2,8,128]{2,1,0:T(8,128)}', space=vmem, size = 0x2000, scoped, tag = 'scratch operand']
  #allocation5 [shape = 'f32[2,8,128]{2,1,0:T(8,128)}', space=vmem, size = 0x2000, scoped, tag = 'scratch operand']
  %s0 = inlined_call_operand.vmem [shape: f32[4,8,128], index: 0, kind: input, shape index: {}]
  %s1 = inlined_call_operand.vmem [shape: f32[4,8,1], index: 1, kind: input, shape index: {}]
  %s2 = inlined_call_operand.vmem [shape: f32[4,8,1], index: 2, kind: input, shape index: {}]
  %s3 = inlined_call_operand.hbm [shape: f32[128,128], index: 3, kind: input, shape index: {}]
  %s4 = inlined_call_operand.vmem [shape: f32[1,128], index: 4, kind: input, shape index: {}]
  %s5 = inlined_call_operand.hbm [shape: f32[128,128], index: 5, kind: input, shape index: {}]
  %s6 = inlined_call_operand.vmem [shape: f32[1,128], index: 6, kind: input, shape index: {}]
  %s7 = inlined_call_operand.hbm [shape: f32[4,8,128], index: 7, kind: output, shape index: {}]
  %s8 = sld [smem:[#allocation0]]
  $region69: #{tpu_custom_call.1} parent=0
    _
  %s10 = ssub.s32 1, %s8
  %s11 = scalar_select 0, %s10, %s8
  $region1: #{tpu_custom_call.1} parent=0
    #allocation6 [shape = 'u8[65536]{0}', space=vmem, size = 0x10000, scoped, tag = 'input window, operand 3, single buffered']
    #allocation7 [shape = 's32[2]{0}', space=sflag, size = 0x8, scoped, tag = 'scoped memory for tpu_custom_call.1']
    #allocation8 [shape = 's32[2]{0}', space=sflag, size = 0x8, scoped, tag = 'scoped memory for tpu_custom_call.1']
    #allocation9 [shape = 'u8[65536]{0}', space=vmem, size = 0x10000, scoped, tag = 'input window, operand 5, single buffered']
    #allocation10 [shape = 's32[1]{0}', space=sflag, size = 0x4, scoped, tag = 'scoped memory for tpu_custom_call.1']
    #allocation11 [shape = 'u8[16384]{0}', space=vmem, size = 0x4000, scoped, tag = 'output window, operand 0']
    %12 = vsyncpa [#allocation7], 0
    %13 = vsyncpa [#allocation10], 0
    %14 = vsyncpa [#allocation8], 0
    %s15 = scalar_lea.sflag [#allocation8], 1
    %16 = vsyncpa %s15, 0
    loop: start=0, step=1, limit=4
    $region2: #{tpu_custom_call.1} parent=1 // loop_pre_header
      _
    $region3: #{tpu_custom_call.1} parent=1 // loop_header
      %s18 = sphi 0, %s22
      %p19 = scmp.ge.s32.totalorder %s18, 4
      %s28 = sphi 0, %s30
      %s31 = sphi 0, %s28
      %s32 = sphi 0, %s31
      %s48 = sphi 0, %s32
      %s54 = sphi 0, %s56
      %s57 = sphi 0, %s54
      %s58 = sphi 0, %s57
      %s74 = sphi 0, %s58
      %s80 = sphi 0, %s82
      %s83 = sphi 0, %s80
      %s84 = sphi 0, %s83
      %s100 = sphi 0, %s84
      %s104 = sphi 0, %s104
      %s106 = sphi 0, %s104
      %s107 = sphi 0, %s106
      %s121 = sphi 0, %s107
      %s125 = sphi 0, %s125
      %s127 = sphi 0, %s125
      %s128 = sphi 0, %s127
      %s142 = sphi 0, %s128
      %s146 = sphi 0, %s146
      %s148 = sphi 0, %s146
      %s149 = sphi 0, %s148
      %s163 = sphi 0, %s149
      %s167 = sphi 0, %s167
      %s169 = sphi 0, %s167
      %s170 = sphi 0, %s169
      %s184 = sphi 0, %s170
      %s190 = sphi 0, %s192
      %s193 = sphi 0, %s190
      %s194 = sphi 0, %s193
      %s210 = sphi 0, %s194
    $region4: #{tpu_custom_call.1} parent=1 // loop_header_branch
      %21 = sbr.rel (%p19) target = $region8
    $region5: #{tpu_custom_call.1} parent=1 // loop_body
      %s23 = ssub.s32 %s18, 1
      %s24 = ssub.s32 %s18, 2
      %s25 = sadd.s32 %s18, 1
      %s26 = ssub.s32 %s18, %s25
      %p27 = scmp.eq.s32.totalorder %s26, 0
      %s29 = sadd.s32 %s28, 1
      %s30 = scalar_select %p27, %s28, %s29
      %p33 = pneg %p27
      %p34 = scmp.eq.s32.totalorder %s18, 1
      %p35 = por %p33, %p34
      %p36 = scmp.ne.s32.totalorder %s28, %s31
      %p37 = scmp.eq.s32.totalorder %s18, 0
      %p38 = por %p36, %p37
      %p39 = scmp.ne.s32.totalorder %s28, %s31
      %p40 = scmp.eq.s32.totalorder %s23, 1
      %p41 = por %p39, %p40
      %p42 = scmp.ne.s32.totalorder %s31, %s32
      %p43 = scmp.eq.s32.totalorder %s23, 0
      %p44 = por %p42, %p43
      %p45 = scmp.ne.s32.totalorder %s31, %s32
      %p46 = scmp.eq.s32.totalorder %s24, 1
      %p47 = por %p45, %p46
      %p49 = scmp.ne.s32.totalorder %s32, %s48
      %p50 = scmp.eq.s32.totalorder %s24, 0
      %p51 = por %p49, %p50
      %s52 = ssub.s32 %s18, %s25
      %p53 = scmp.eq.s32.totalorder %s52, 0
      %s55 = sadd.s32 %s54, 1
      %s56 = scalar_select %p53, %s54, %s55
      %p59 = pneg %p53
      %p60 = scmp.eq.s32.totalorder %s18, 1
      %p61 = por %p59, %p60
      %p62 = scmp.ne.s32.totalorder %s54, %s57
      %p63 = scmp.eq.s32.totalorder %s18, 0
      %p64 = por %p62, %p63
      %p65 = scmp.ne.s32.totalorder %s54, %s57
      %p66 = scmp.eq.s32.totalorder %s23, 1
      %p67 = por %p65, %p66
      %p68 = scmp.ne.s32.totalorder %s57, %s58
      %p69 = scmp.eq.s32.totalorder %s23, 0
      %p70 = por %p68, %p69
      %p71 = scmp.ne.s32.totalorder %s57, %s58
      %p72 = scmp.eq.s32.totalorder %s24, 1
      %p73 = por %p71, %p72
      %p75 = scmp.ne.s32.totalorder %s58, %s74
      %p76 = scmp.eq.s32.totalorder %s24, 0
      %p77 = por %p75, %p76
      %s78 = ssub.s32 %s18, %s25
      %p79 = scmp.eq.s32.totalorder %s78, 0
      %s81 = sadd.s32 %s80, 1
      %s82 = scalar_select %p79, %s80, %s81
      %p85 = pneg %p79
      %p86 = scmp.eq.s32.totalorder %s18, 1
      %p87 = por %p85, %p86
      %p88 = scmp.ne.s32.totalorder %s80, %s83
      %p89 = scmp.eq.s32.totalorder %s18, 0
      %p90 = por %p88, %p89
      %p91 = scmp.ne.s32.totalorder %s80, %s83
      %p92 = scmp.eq.s32.totalorder %s23, 1
      %p93 = por %p91, %p92
      %p94 = scmp.ne.s32.totalorder %s83, %s84
      %p95 = scmp.eq.s32.totalorder %s23, 0
      %p96 = por %p94, %p95
      %p97 = scmp.ne.s32.totalorder %s83, %s84
      %p98 = scmp.eq.s32.totalorder %s24, 1
      %p99 = por %p97, %p98
      %p101 = scmp.ne.s32.totalorder %s84, %s100
      %p102 = scmp.eq.s32.totalorder %s24, 0
      %p103 = por %p101, %p102
      %s105 = sadd.s32 %s104, 1
      %p108 = scmp.eq.s32.totalorder %s18, 1
      %p109 = scmp.ne.s32.totalorder %s104, %s106
      %p110 = scmp.eq.s32.totalorder %s18, 0
      %p111 = por %p109, %p110
      %p112 = scmp.ne.s32.totalorder %s104, %s106
      %p113 = scmp.eq.s32.totalorder %s23, 1
      %p114 = por %p112, %p113
      %p115 = scmp.ne.s32.totalorder %s106, %s107
      %p116 = scmp.eq.s32.totalorder %s23, 0
      %p117 = por %p115, %p116
      %p118 = scmp.ne.s32.totalorder %s106, %s107
      %p119 = scmp.eq.s32.totalorder %s24, 1
      %p120 = por %p118, %p119
      %p122 = scmp.ne.s32.totalorder %s107, %s121
      %p123 = scmp.eq.s32.totalorder %s24, 0
      %p124 = por %p122, %p123
      %s126 = sadd.s32 %s125, 1
      %p129 = scmp.eq.s32.totalorder %s18, 1
      %p130 = scmp.ne.s32.totalorder %s125, %s127
      %p131 = scmp.eq.s32.totalorder %s18, 0
      %p132 = por %p130, %p131
      %p133 = scmp.ne.s32.totalorder %s125, %s127
      %p134 = scmp.eq.s32.totalorder %s23, 1
      %p135 = por %p133, %p134
      %p136 = scmp.ne.s32.totalorder %s127, %s128
      %p137 = scmp.eq.s32.totalorder %s23, 0
      %p138 = por %p136, %p137
      %p139 = scmp.ne.s32.totalorder %s127, %s128
      %p140 = scmp.eq.s32.totalorder %s24, 1
      %p141 = por %p139, %p140
      %p143 = scmp.ne.s32.totalorder %s128, %s142
      %p144 = scmp.eq.s32.totalorder %s24, 0
      %p145 = por %p143, %p144
      %s147 = sadd.s32 %s146, 1
      %p150 = scmp.eq.s32.totalorder %s18, 1
      %p151 = scmp.ne.s32.totalorder %s146, %s148
      %p152 = scmp.eq.s32.totalorder %s18, 0
      %p153 = por %p151, %p152
      %p154 = scmp.ne.s32.totalorder %s146, %s148
      %p155 = scmp.eq.s32.totalorder %s23, 1
      %p156 = por %p154, %p155
      %p157 = scmp.ne.s32.totalorder %s148, %s149
      %p158 = scmp.eq.s32.totalorder %s23, 0
      %p159 = por %p157, %p158
      %p160 = scmp.ne.s32.totalorder %s148, %s149
      %p161 = scmp.eq.s32.totalorder %s24, 1
      %p162 = por %p160, %p161
      %p164 = scmp.ne.s32.totalorder %s149, %s163
      %p165 = scmp.eq.s32.totalorder %s24, 0
      %p166 = por %p164, %p165
      %s168 = sadd.s32 %s167, 1
      %p171 = scmp.eq.s32.totalorder %s18, 1
      %p172 = scmp.ne.s32.totalorder %s167, %s169
      %p173 = scmp.eq.s32.totalorder %s18, 0
      %p174 = por %p172, %p173
      %p175 = scmp.ne.s32.totalorder %s167, %s169
      %p176 = scmp.eq.s32.totalorder %s23, 1
      %p177 = por %p175, %p176
      %p178 = scmp.ne.s32.totalorder %s169, %s170
      %p179 = scmp.eq.s32.totalorder %s23, 0
      %p180 = por %p178, %p179
      %p181 = scmp.ne.s32.totalorder %s169, %s170
      %p182 = scmp.eq.s32.totalorder %s24, 1
      %p183 = por %p181, %p182
      %p185 = scmp.ne.s32.totalorder %s170, %s184
      %p186 = scmp.eq.s32.totalorder %s24, 0
      %p187 = por %p185, %p186
      %s188 = ssub.s32 %s18, %s25
      %p189 = scmp.eq.s32.totalorder %s188, 0
      %s191 = sadd.s32 %s190, 1
      %s192 = scalar_select %p189, %s190, %s191
      %p195 = pneg %p189
      %p196 = scmp.eq.s32.totalorder %s18, 1
      %p197 = por %p195, %p196
      %p198 = scmp.ne.s32.totalorder %s190, %s193
      %p199 = scmp.eq.s32.totalorder %s18, 0
      %p200 = por %p198, %p199
      %p201 = scmp.ne.s32.totalorder %s190, %s193
      %p202 = scmp.eq.s32.totalorder %s23, 1
      %p203 = por %p201, %p202
      %p204 = scmp.ne.s32.totalorder %s193, %s194
      %p205 = scmp.eq.s32.totalorder %s23, 0
      %p206 = por %p204, %p205
      %p207 = scmp.ne.s32.totalorder %s193, %s194
      %p208 = scmp.eq.s32.totalorder %s24, 1
      %p209 = por %p207, %p208
      %p211 = scmp.ne.s32.totalorder %s194, %s210
      %p212 = scmp.eq.s32.totalorder %s24, 0
      %p213 = por %p211, %p212
      %p214 = scmp.le.s32.totalorder 1, %s18
      %p215 = scmp.lt.s32.totalorder %s18, 3
      %p216 = pnand %p214, %p215
      %p217 = pneg %p216
      // Predicated region
      $region9: #{tpu_custom_call.1} parent=5 // pred_check
        _
      $region10: #{tpu_custom_call.1} parent=5 // pred_check_branch
        %219 = sbr.rel (%p216) target = $region12
      $region11: #{tpu_custom_call.1} parent=5 // pred_region
        %s220 = ssub.s32 %s18, 1
        // Predicated region
        $region13: #{tpu_custom_call.1} parent=11 // pred_check
          %p221 = pneg %p117
        $region14: #{tpu_custom_call.1} parent=11 // pred_check_branch
          %223 = sbr.rel (%p221) target = $region16
        $region15: #{tpu_custom_call.1} parent=11 // pred_region
          %s225 = ssub.s32 2048, 2048
          %226 = vsyncadd [#allocation7], %s225
          %s227 = sshll.u32 [#allocation6], 4
          %s228 = int_to_ptr.vmem [resolvable:$true] %s227
          %233 = dma.hbm_to_vmem [thread:$0]  %s3, 2048, %s228, [#allocation7], 128, 128, 8
        $region16: #{tpu_custom_call.1} parent=11 // pred_fallthru
          _
        // Predicated region
        $region17: #{tpu_custom_call.1} parent=11 // pred_check
          %p234 = pneg %p138
        $region18: #{tpu_custom_call.1} parent=11 // pred_check_branch
          %236 = sbr.rel (%p234) target = $region20
        $region19: #{tpu_custom_call.1} parent=11 // pred_region
          _
        $region20: #{tpu_custom_call.1} parent=11 // pred_fallthru
          _
        // Predicated region
        $region21: #{tpu_custom_call.1} parent=11 // pred_check
          %p237 = pneg %p159
        $region22: #{tpu_custom_call.1} parent=11 // pred_check_branch
          %239 = sbr.rel (%p237) target = $region24
        $region23: #{tpu_custom_call.1} parent=11 // pred_region
          %s241 = ssub.s32 2048, 2048
          %242 = vsyncadd [#allocation10], %s241
          %s243 = sshll.u32 [#allocation9], 4
          %s244 = int_to_ptr.vmem [resolvable:$true] %s243
          %249 = dma.hbm_to_vmem [thread:$0]  %s5, 2048, %s244, [#allocation10], 128, 128, 8
        $region24: #{tpu_custom_call.1} parent=11 // pred_fallthru
          _
        // Predicated region
        $region25: #{tpu_custom_call.1} parent=11 // pred_check
          %p250 = pneg %p180
        $region26: #{tpu_custom_call.1} parent=11 // pred_check_branch
          %252 = sbr.rel (%p250) target = $region28
        $region27: #{tpu_custom_call.1} parent=11 // pred_region
          _
        $region28: #{tpu_custom_call.1} parent=11 // pred_fallthru
          _
      $region12: #{tpu_custom_call.1} parent=5 // pred_fallthru
        _
      %p253 = scmp.lt.s32.totalorder %s18, 2
      // Predicated region
      $region29: #{tpu_custom_call.1} parent=5 // pred_check
        %p254 = pneg %p253
      $region30: #{tpu_custom_call.1} parent=5 // pred_check_branch
        %256 = sbr.rel (%p254) target = $region32
      $region31: #{tpu_custom_call.1} parent=5 // pred_region
        // Predicated region
        $region33: #{tpu_custom_call.1} parent=31 // pred_check
          %p257 = pneg %p38
        $region34: #{tpu_custom_call.1} parent=31 // pred_check_branch
          %259 = sbr.rel (%p257) target = $region36
        $region35: #{tpu_custom_call.1} parent=31 // pred_region
          %s260 = smul.u32 2, %s18
          %p261 = scmp.lt.s32.totalorder %s260, 3
          %s262 = scalar_select %p261, %s260, 3
          %s263 = smul.addr %s262, 8
          %s264 = scalar_lea.vmem %s0, %s263
          %s265 = smul.u32 2, %s18
        $region36: #{tpu_custom_call.1} parent=31 // pred_fallthru
          _
        // Predicated region
        $region37: #{tpu_custom_call.1} parent=31 // pred_check
          %p266 = pneg %p64
        $region38: #{tpu_custom_call.1} parent=31 // pred_check_branch
          %268 = sbr.rel (%p266) target = $region40
        $region39: #{tpu_custom_call.1} parent=31 // pred_region
          %s269 = smul.u32 2, %s18
          %p270 = scmp.lt.s32.totalorder %s269, 3
          %s271 = scalar_select %p270, %s269, 3
          %s272 = smul.addr %s271, 8
          %s273 = scalar_lea.vmem %s1, %s272
          %s274 = smul.u32 2, %s18
        $region40: #{tpu_custom_call.1} parent=31 // pred_fallthru
          _
        // Predicated region
        $region41: #{tpu_custom_call.1} parent=31 // pred_check
          %p275 = pneg %p90
        $region42: #{tpu_custom_call.1} parent=31 // pred_check_branch
          %277 = sbr.rel (%p275) target = $region44
        $region43: #{tpu_custom_call.1} parent=31 // pred_region
          %s278 = smul.u32 2, %s18
          %p279 = scmp.lt.s32.totalorder %s278, 3
          %s280 = scalar_select %p279, %s278, 3
          %s281 = smul.addr %s280, 8
          %s282 = scalar_lea.vmem %s2, %s281
          %s283 = smul.u32 2, %s18
        $region44: #{tpu_custom_call.1} parent=31 // pred_fallthru
          _
      $region32: #{tpu_custom_call.1} parent=5 // pred_fallthru
        _
      %p284 = scmp.le.s32.totalorder 1, %s18
      %p285 = scmp.lt.s32.totalorder %s18, 3
      %p286 = pnand %p284, %p285
      %p287 = pneg %p286
      // Predicated region
      $region45: #{tpu_custom_call.1} parent=5 // pred_check
        _
      $region46: #{tpu_custom_call.1} parent=5 // pred_check_branch
        %289 = sbr.rel (%p286) target = $region48
      $region47: #{tpu_custom_call.1} parent=5 // pred_region
        %s290 = ssub.s32 %s18, 1
        // Predicated region
        $region49: #{tpu_custom_call.1} parent=47 // pred_check
          %p291 = pneg %p117
        $region50: #{tpu_custom_call.1} parent=47 // pred_check_branch
          %293 = sbr.rel (%p291) target = $region52
        $region51: #{tpu_custom_call.1} parent=47 // pred_region
          %294 = dma.done [#allocation7], 2048
        $region52: #{tpu_custom_call.1} parent=47 // pred_fallthru
          _
        // Predicated region
        $region53: #{tpu_custom_call.1} parent=47 // pred_check
          %p295 = pneg %p159
        $region54: #{tpu_custom_call.1} parent=47 // pred_check_branch
          %297 = sbr.rel (%p295) target = $region56
        $region55: #{tpu_custom_call.1} parent=47 // pred_region
          %298 = dma.done [#allocation10], 2048
        $region56: #{tpu_custom_call.1} parent=47 // pred_fallthru
          _
        %s299 = smul.u32 2, %s23
        %p300 = scmp.lt.s32.totalorder %s299, 3
        %s301 = scalar_select %p300, %s299, 3
        %s302 = smul.addr %s301, 8
        %s303 = scalar_lea.vmem %s0, %s302
        %p304 = pneg %p44
        %p305 = pneg %p41
        %s306 = smul.u32 2, %s23
        %p307 = scmp.lt.s32.totalorder %s306, 3
        %s308 = scalar_select %p307, %s306, 3
        %s309 = smul.addr %s308, 8
        %s310 = scalar_lea.vmem %s1, %s309
        %p311 = pneg %p70
        %p312 = pneg %p67
        %s313 = smul.u32 2, %s23
        %p314 = scmp.lt.s32.totalorder %s313, 3
        %s315 = scalar_select %p314, %s313, 3
        %s316 = smul.addr %s315, 8
        %s317 = scalar_lea.vmem %s2, %s316
        %p318 = pneg %p96
        %p319 = pneg %p93
        %p320 = pneg %p117
        %p321 = pneg %p114
        %p322 = pneg %p138
        %p323 = pneg %p135
        %p324 = pneg %p159
        %p325 = pneg %p156
        %p326 = pneg %p180
        %p327 = pneg %p177
        %p328 = pneg %p206
        %p329 = pneg %p203
        %s330 = sand.u32 %s193, 1
        %s331 = scalar_lea.sflag [#allocation8], %s330
        %s332 = sand.u32 %s193, 1
        %s333 = smul.addr %s332, 16
        %s334 = scalar_lea.vmem [#allocation11], %s333
        %s335 = smul.u32 2, %s23
        %p336 = scmp.lt.s32.totalorder %s335, 3
        %s337 = scalar_select %p336, %s335, 3
        %s338 = smul.addr %s337, 8
        %s339 = scalar_lea.vmem %s0, %s338
        %s340 = smul.u32 2, %s23
        %s341 = smul.u32 2, %s23
        %p342 = scmp.lt.s32.totalorder %s341, 3
        %s343 = scalar_select %p342, %s341, 3
        %s344 = smul.addr %s343, 8
        %s345 = scalar_lea.vmem %s1, %s344
        %s346 = smul.u32 2, %s23
        %s347 = smul.u32 2, %s23
        %p348 = scmp.lt.s32.totalorder %s347, 3
        %s349 = scalar_select %p348, %s347, 3
        %s350 = smul.addr %s349, 8
        %s351 = scalar_lea.vmem %s2, %s350
        %s352 = smul.u32 2, %s23
        %s353 = smul.u32 2, %s23
        %v354 = vld [vmem:[%s339] sm:$0xff]
        %v355 = vld [vmem:[%s339 + $0x8] sm:$0xff]
        %v356 = vld [vmem:[#allocation6] sm:$0xff]
        %v357 = vld [vmem:[#allocation6 + $0x8] sm:$0xff]
        %v358 = vld [vmem:[#allocation6 + $0x10] sm:$0xff]
        %v359 = vld [vmem:[#allocation6 + $0x18] sm:$0xff]
        %v360 = vld [vmem:[#allocation6 + $0x20] sm:$0xff]
        %v361 = vld [vmem:[#allocation6 + $0x28] sm:$0xff]
        %v362 = vld [vmem:[#allocation6 + $0x30] sm:$0xff]
        %v363 = vld [vmem:[#allocation6 + $0x38] sm:$0xff]
        %v364 = vld [vmem:[#allocation6 + $0x40] sm:$0xff]
        %v365 = vld [vmem:[#allocation6 + $0x48] sm:$0xff]
        %v366 = vld [vmem:[#allocation6 + $0x50] sm:$0xff]
        %v367 = vld [vmem:[#allocation6 + $0x58] sm:$0xff]
        %v368 = vld [vmem:[#allocation6 + $0x60] sm:$0xff]
        %v369 = vld [vmem:[#allocation6 + $0x68] sm:$0xff]
        %v370 = vld [vmem:[#allocation6 + $0x70] sm:$0xff]
        %v371 = vld [vmem:[#allocation6 + $0x78] sm:$0xff]
        %v372 = vld [vmem:[#allocation9] sm:$0xff]
        %v373 = vld [vmem:[#allocation9 + $0x8] sm:$0xff]
        %v374 = vld [vmem:[#allocation9 + $0x10] sm:$0xff]
        %v375 = vld [vmem:[#allocation9 + $0x18] sm:$0xff]
        %v376 = vld [vmem:[#allocation9 + $0x20] sm:$0xff]
        %v377 = vld [vmem:[#allocation9 + $0x28] sm:$0xff]
        %v378 = vld [vmem:[#allocation9 + $0x30] sm:$0xff]
        %v379 = vld [vmem:[#allocation9 + $0x38] sm:$0xff]
        %v380 = vld [vmem:[#allocation9 + $0x40] sm:$0xff]
        %v381 = vld [vmem:[#allocation9 + $0x48] sm:$0xff]
        %v382 = vld [vmem:[#allocation9 + $0x50] sm:$0xff]
        %v383 = vld [vmem:[#allocation9 + $0x58] sm:$0xff]
        %v384 = vld [vmem:[#allocation9 + $0x60] sm:$0xff]
        %v385 = vld [vmem:[#allocation9 + $0x68] sm:$0xff]
        %v386 = vld [vmem:[#allocation9 + $0x70] sm:$0xff]
        %v387 = vld [vmem:[#allocation9 + $0x78] sm:$0xff]
        %v388 = vld [vmem:[%s4] sm:$0x1]
        %v390 = vlaneseq
        %v391 = vshrl.u32 %v390, 7
        %v392 = vsub.s32 0, %v391
        %v393 = vrot.slane %v388, %v392
        %395 = vmatprep.subr.mxu0 0.0
        %396 = vmatpush1.msra.mxu0 %v356
        %397 = vmatprep.subr.mxu0 0.0
        %398 = vmatpush1.msra.mxu0 %v357
        %399 = vmatprep.subr.mxu0 0.0
        %400 = vmatpush1.msra.mxu0 %v358
        %401 = vmatprep.subr.mxu0 0.0
        %402 = vmatpush1.msra.mxu0 %v359
        %403 = vmatprep.subr.mxu0 0.0
        %404 = vmatpush1.msra.mxu0 %v360
        %405 = vmatprep.subr.mxu0 0.0
        %406 = vmatpush1.msra.mxu0 %v361
        %407 = vmatprep.subr.mxu0 0.0
        %408 = vmatpush1.msra.mxu0 %v362
        %409 = vmatprep.subr.mxu0 0.0
        %410 = vmatpush1.msra.mxu0 %v363
        %411 = vmatprep.subr.mxu0 0.0
        %412 = vmatpush1.msra.mxu0 %v364
        %413 = vmatprep.subr.mxu0 0.0
        %414 = vmatpush1.msra.mxu0 %v365
        %415 = vmatprep.subr.mxu0 0.0
        %416 = vmatpush1.msra.mxu0 %v366
        %417 = vmatprep.subr.mxu0 0.0
        %418 = vmatpush1.msra.mxu0 %v367
        %419 = vmatprep.subr.mxu0 0.0
        %420 = vmatpush1.msra.mxu0 %v368
        %421 = vmatprep.subr.mxu0 0.0
        %422 = vmatpush1.msra.mxu0 %v369
        %423 = vmatprep.subr.mxu0 0.0
        %424 = vmatpush1.msra.mxu0 %v370
        %425 = vmatprep.subr.mxu0 0.0
        %426 = vmatpush1.msra.mxu0 %v371
        %427 = vmatprep.subr.mxu0 0.0
        %428 = vmatpush1.msra.mxu0 0.0
        %429 = vmatprep.subr.mxu0 0.0
        %430 = vmatpush1.msra.mxu0 0.0
        %431 = vmatprep.subr.mxu0 0.0
        %432 = vmatpush1.msra.mxu0 0.0
        %433 = vmatprep.subr.mxu0 0.0
        %434 = vmatpush1.msra.mxu0 0.0
        %435 = vmatprep.subr.mxu0 0.0
        %436 = vmatpush1.msra.mxu0 0.0
        %437 = vmatprep.subr.mxu0 0.0
        %438 = vmatpush1.msra.mxu0 0.0
        %439 = vmatprep.subr.mxu0 0.0
        %440 = vmatpush1.msra.mxu0 0.0
        %441 = vmatprep.subr.mxu0 0.0
        %442 = vmatpush1.msra.mxu0 0.0
        %443 = vmatprep.subr.mxu0 0.0
        %444 = vmatpush1.msra.mxu0 0.0
        %445 = vmatprep.subr.mxu0 0.0
        %446 = vmatpush1.msra.mxu0 0.0
        %447 = vmatprep.subr.mxu0 0.0
        %448 = vmatpush1.msra.mxu0 0.0
        %449 = vmatprep.subr.mxu0 0.0
        %450 = vmatpush1.msra.mxu0 0.0
        %451 = vmatprep.subr.mxu0 0.0
        %452 = vmatpush1.msra.mxu0 0.0
        %453 = vmatprep.subr.mxu0 0.0
        %454 = vmatpush1.msra.mxu0 0.0
        %455 = vmatprep.subr.mxu0 0.0
        %456 = vmatpush1.msra.mxu0 0.0
        %457 = vmatprep.subr.mxu0 0.0
        %458 = vmatpush1.msra.mxu0 0.0
        %459 = vmatprep.mubr.f32.mxu0 0.0
        %460 = vmatmul.mubr.f32.gmra.mrb[0].mxu0 %v354
        %v461 = vpop.f32.mrb[0].mxu0
        %v462 = vadd.f32 %v393, %v461
        %v463 = vpop.f32.mrb[0].mxu0
        %464 = vmatprep.mubr.f32.mxu0 0.0
        %465 = vmatmul.mubr.f32.gmra.mrb[0].mxu0 %v355
        %v466 = vpop.f32.mrb[0].mxu0
        %v467 = vadd.f32 %v393, %v466
        %v468 = vpop.f32.mrb[0].mxu0
        %469 = vdwg.mxu0
        %v470 = vld [vmem:[%s6] sm:$0x1]
        %v472 = vlaneseq
        %v473 = vshrl.u32 %v472, 7
        %v474 = vsub.s32 0, %v473
        %v475 = vrot.slane %v470, %v474
        %477 = vmatprep.subr.mxu0 0.0
        %478 = vmatpush1.msra.mxu0 %v372
        %479 = vmatprep.subr.mxu0 0.0
        %480 = vmatpush1.msra.mxu0 %v373
        %481 = vmatprep.subr.mxu0 0.0
        %482 = vmatpush1.msra.mxu0 %v374
        %483 = vmatprep.subr.mxu0 0.0
        %484 = vmatpush1.msra.mxu0 %v375
        %485 = vmatprep.subr.mxu0 0.0
        %486 = vmatpush1.msra.mxu0 %v376
        %487 = vmatprep.subr.mxu0 0.0
        %488 = vmatpush1.msra.mxu0 %v377
        %489 = vmatprep.subr.mxu0 0.0
        %490 = vmatpush1.msra.mxu0 %v378
        %491 = vmatprep.subr.mxu0 0.0
        %492 = vmatpush1.msra.mxu0 %v379
        %493 = vmatprep.subr.mxu0 0.0
        %494 = vmatpush1.msra.mxu0 %v380
        %495 = vmatprep.subr.mxu0 0.0
        %496 = vmatpush1.msra.mxu0 %v381
        %497 = vmatprep.subr.mxu0 0.0
        %498 = vmatpush1.msra.mxu0 %v382
        %499 = vmatprep.subr.mxu0 0.0
        %500 = vmatpush1.msra.mxu0 %v383
        %501 = vmatprep.subr.mxu0 0.0
        %502 = vmatpush1.msra.mxu0 %v384
        %503 = vmatprep.subr.mxu0 0.0
        %504 = vmatpush1.msra.mxu0 %v385
        %505 = vmatprep.subr.mxu0 0.0
        %506 = vmatpush1.msra.mxu0 %v386
        %507 = vmatprep.subr.mxu0 0.0
        %508 = vmatpush1.msra.mxu0 %v387
        %509 = vmatprep.subr.mxu0 0.0
        %510 = vmatpush1.msra.mxu0 0.0
        %511 = vmatprep.subr.mxu0 0.0
        %512 = vmatpush1.msra.mxu0 0.0
        %513 = vmatprep.subr.mxu0 0.0
        %514 = vmatpush1.msra.mxu0 0.0
        %515 = vmatprep.subr.mxu0 0.0
        %516 = vmatpush1.msra.mxu0 0.0
        %517 = vmatprep.subr.mxu0 0.0
        %518 = vmatpush1.msra.mxu0 0.0
        %519 = vmatprep.subr.mxu0 0.0
        %520 = vmatpush1.msra.mxu0 0.0
        %521 = vmatprep.subr.mxu0 0.0
        %522 = vmatpush1.msra.mxu0 0.0
        %523 = vmatprep.subr.mxu0 0.0
        %524 = vmatpush1.msra.mxu0 0.0
        %525 = vmatprep.subr.mxu0 0.0
        %526 = vmatpush1.msra.mxu0 0.0
        %527 = vmatprep.subr.mxu0 0.0
        %528 = vmatpush1.msra.mxu0 0.0
        %529 = vmatprep.subr.mxu0 0.0
        %530 = vmatpush1.msra.mxu0 0.0
        %531 = vmatprep.subr.mxu0 0.0
        %532 = vmatpush1.msra.mxu0 0.0
        %533 = vmatprep.subr.mxu0 0.0
        %534 = vmatpush1.msra.mxu0 0.0
        %535 = vmatprep.subr.mxu0 0.0
        %536 = vmatpush1.msra.mxu0 0.0
        %537 = vmatprep.subr.mxu0 0.0
        %538 = vmatpush1.msra.mxu0 0.0
        %539 = vmatprep.subr.mxu0 0.0
        %540 = vmatpush1.msra.mxu0 0.0
        %541 = vmatprep.mubr.f32.mxu0 0.0
        %542 = vmatmul.mubr.f32.gmra.mrb[0].mxu0 %v354
        %v543 = vpop.f32.mrb[0].mxu0
        %v544 = vadd.f32 %v475, %v543
        %v545 = vpop.f32.mrb[0].mxu0
        %546 = vmatprep.mubr.f32.mxu0 0.0
        %547 = vmatmul.mubr.f32.gmra.mrb[0].mxu0 %v355
        %v548 = vpop.f32.mrb[0].mxu0
        %v549 = vadd.f32 %v475, %v548
        %v550 = vpop.f32.mrb[0].mxu0
        %551 = vdwg.mxu0
        %552 = vst [vmem:[#allocation2] sm:$0xff] %v462
        %553 = vst [vmem:[#allocation2 + $0x8] sm:$0xff] %v467
        %554 = vst [vmem:[#allocation3] sm:$0xff] %v544
        %555 = vst [vmem:[#allocation3 + $0x8] sm:$0xff] %v549
        %v556 = vld [vmem:[%s345] sm:$0xff]
        %v557 = vld [vmem:[%s345 + $0x8] sm:$0xff]
        %559 = vset.pattern.permute.xlu0 0
        %560 = vperm.xlu0 %559, %v556
        %v561 = vpop.permute.xlu0 %560
        %564 = vset.pattern.permute.xlu0 0
        %565 = vperm.xlu0 %564, %v557
        %v566 = vpop.permute.xlu0 %565
        %v568 = vmul.f32 %v354, %v561
        %v569 = vmul.f32 %v355, %v566
        %570 = vst [vmem:[#allocation4] sm:$0xff] %v568
        %571 = vst [vmem:[#allocation4 + $0x8] sm:$0xff] %v569
        %572 = vst [vmem:[#allocation5] sm:$0xff] 0.0
        %573 = vst [vmem:[#allocation5 + $0x8] sm:$0xff] 0.0
        %v574 = vld [vmem:[#allocation3] sm:$0xff]
        %v575 = vld [vmem:[#allocation3 + $0x8] sm:$0xff]
        %v576 = vld [vmem:[#allocation4] sm:$0xff]
        %v577 = vld [vmem:[#allocation4 + $0x8] sm:$0xff]
        %v578 = vld [vmem:[#allocation2] sm:$0xff]
        %v579 = vld [vmem:[#allocation2 + $0x8] sm:$0xff]
        %v580 = vld [vmem:[#allocation5] sm:$0xff]
        %v581 = vld [vmem:[#allocation5 + $0x8] sm:$0xff]
        %v582 = vlaneseq
        %v583 = vshrl.u32 %v582, 7
        %v584 = vsub.s32 0, %v583
        %v585 = vrot.slane %v574, %v584
        %v586 = vlaneseq
        %v587 = vshrl.u32 %v586, 7
        %v588 = vsub.s32 0, %v587
        %v589 = vrot.slane %v575, %v588
        %v590 = vadd.f32 %v578, %v585
        %v591 = vadd.f32 %v579, %v589
        %v592 = vxor.u32 %v590, 2147483648
        %v593 = vxor.u32 %v591, 2147483648
        %v594 = vmul.f32 %v592, 1.442695
        %v595 = vpow.pop %v594
        %v596 = vmul.f32 %v593, 1.442695
        %v597 = vpow.pop %v596
        %v598 = vadd.f32 %v595, 1.0
        %v599 = vadd.f32 %v597, 1.0
        %v600 = vrcp.pop %v598
        %v601 = vmul.f32 1.0, %v600
        %v602 = vrcp.pop %v599
        %v603 = vmul.f32 1.0, %v602
        %v604 = vlaneseq
        %v605 = vshrl.u32 %v604, 7
        %v606 = vsub.s32 0, %v605
        %v607 = vrot.slane %v576, %v606
        %v608 = vlaneseq
        %v609 = vshrl.u32 %v608, 7
        %v610 = vsub.s32 0, %v609
        %v611 = vrot.slane %v577, %v610
        %v612 = vmul.f32 %v601, %v607
        %v613 = vmul.f32 %v603, %v611
        %v614 = vadd.f32 %v580, %v612
        %v615 = vadd.f32 %v581, %v613
        %v616 = vlaneseq
        %v617 = vshrl.u32 %v616, 7
        %v618 = vsub.s32 1, %v617
        %v619 = vrot.slane %v574, %v618
        %v620 = vlaneseq
        %v621 = vshrl.u32 %v620, 7
        %v622 = vsub.s32 1, %v621
        %v623 = vrot.slane %v575, %v622
        %v624 = vadd.f32 %v578, %v619
        %v625 = vadd.f32 %v579, %v623
        %v626 = vxor.u32 %v624, 2147483648
        %v627 = vxor.u32 %v625, 2147483648
        %v628 = vmul.f32 %v626, 1.442695
        %v629 = vpow.pop %v628
        %v630 = vmul.f32 %v627, 1.442695
        %v631 = vpow.pop %v630
        %v632 = vadd.f32 %v629, 1.0
        %v633 = vadd.f32 %v631, 1.0
        %v634 = vrcp.pop %v632
        %v635 = vmul.f32 1.0, %v634
        %v636 = vrcp.pop %v633
        %v637 = vmul.f32 1.0, %v636
        %v638 = vlaneseq
        %v639 = vshrl.u32 %v638, 7
        %v640 = vsub.s32 1, %v639
        %v641 = vrot.slane %v576, %v640
        %v642 = vlaneseq
        %v643 = vshrl.u32 %v642, 7
        %v644 = vsub.s32 1, %v643
        %v645 = vrot.slane %v577, %v644
        %v646 = vmul.f32 %v635, %v641
        %v647 = vmul.f32 %v637, %v645
        %v648 = vadd.f32 %v614, %v646
        %v649 = vadd.f32 %v615, %v647
        %v650 = vlaneseq
        %v651 = vshrl.u32 %v650, 7
        %v652 = vsub.s32 2, %v651
        %v653 = vrot.slane %v574, %v652
        %v654 = vlaneseq
        %v655 = vshrl.u32 %v654, 7
        %v656 = vsub.s32 2, %v655
        %v657 = vrot.slane %v575, %v656
        %v658 = vadd.f32 %v578, %v653
        %v659 = vadd.f32 %v579, %v657
        %v660 = vxor.u32 %v658, 2147483648
        %v661 = vxor.u32 %v659, 2147483648
        %v662 = vmul.f32 %v660, 1.442695
        %v663 = vpow.pop %v662
        %v664 = vmul.f32 %v661, 1.442695
        %v665 = vpow.pop %v664
        %v666 = vadd.f32 %v663, 1.0
        %v667 = vadd.f32 %v665, 1.0
        %v668 = vrcp.pop %v666
        %v669 = vmul.f32 1.0, %v668
        %v670 = vrcp.pop %v667
        %v671 = vmul.f32 1.0, %v670
        %v672 = vlaneseq
        %v673 = vshrl.u32 %v672, 7
        %v674 = vsub.s32 2, %v673
        %v675 = vrot.slane %v576, %v674
        %v676 = vlaneseq
        %v677 = vshrl.u32 %v676, 7
        %v678 = vsub.s32 2, %v677
        %v679 = vrot.slane %v577, %v678
        %v680 = vmul.f32 %v669, %v675
        %v681 = vmul.f32 %v671, %v679
        %v682 = vadd.f32 %v648, %v680
        %v683 = vadd.f32 %v649, %v681
        %v684 = vlaneseq
        %v685 = vshrl.u32 %v684, 7
        %v686 = vsub.s32 3, %v685
        %v687 = vrot.slane %v574, %v686
        %v688 = vlaneseq
        %v689 = vshrl.u32 %v688, 7
        %v690 = vsub.s32 3, %v689
        %v691 = vrot.slane %v575, %v690
        %v692 = vadd.f32 %v578, %v687
        %v693 = vadd.f32 %v579, %v691
        %v694 = vxor.u32 %v692, 2147483648
        %v695 = vxor.u32 %v693, 2147483648
        %v696 = vmul.f32 %v694, 1.442695
        %v697 = vpow.pop %v696
        %v698 = vmul.f32 %v695, 1.442695
        %v699 = vpow.pop %v698
        %v700 = vadd.f32 %v697, 1.0
        %v701 = vadd.f32 %v699, 1.0
        %v702 = vrcp.pop %v700
        %v703 = vmul.f32 1.0, %v702
        %v704 = vrcp.pop %v701
        %v705 = vmul.f32 1.0, %v704
        %v706 = vlaneseq
        %v707 = vshrl.u32 %v706, 7
        %v708 = vsub.s32 3, %v707
        %v709 = vrot.slane %v576, %v708
        %v710 = vlaneseq
        %v711 = vshrl.u32 %v710, 7
        %v712 = vsub.s32 3, %v711
        %v713 = vrot.slane %v577, %v712
        %v714 = vmul.f32 %v703, %v709
        %v715 = vmul.f32 %v705, %v713
        %v716 = vadd.f32 %v682, %v714
        %v717 = vadd.f32 %v683, %v715
        %v718 = vlaneseq
        %v719 = vshrl.u32 %v718, 7
        %v720 = vsub.s32 4, %v719
        %v721 = vrot.slane %v574, %v720
        %v722 = vlaneseq
        %v723 = vshrl.u32 %v722, 7
        %v724 = vsub.s32 4, %v723
        %v725 = vrot.slane %v575, %v724
        %v726 = vadd.f32 %v578, %v721
        %v727 = vadd.f32 %v579, %v725
        %v728 = vxor.u32 %v726, 2147483648
        %v729 = vxor.u32 %v727, 2147483648
        %v730 = vmul.f32 %v728, 1.442695
        %v731 = vpow.pop %v730
        %v732 = vmul.f32 %v729, 1.442695
        %v733 = vpow.pop %v732
        %v734 = vadd.f32 %v731, 1.0
        %v735 = vadd.f32 %v733, 1.0
        %v736 = vrcp.pop %v734
        %v737 = vmul.f32 1.0, %v736
        %v738 = vrcp.pop %v735
        %v739 = vmul.f32 1.0, %v738
        %v740 = vlaneseq
        %v741 = vshrl.u32 %v740, 7
        %v742 = vsub.s32 4, %v741
        %v743 = vrot.slane %v576, %v742
        %v744 = vlaneseq
        %v745 = vshrl.u32 %v744, 7
        %v746 = vsub.s32 4, %v745
        %v747 = vrot.slane %v577, %v746
        %v748 = vmul.f32 %v737, %v743
        %v749 = vmul.f32 %v739, %v747
        %v750 = vadd.f32 %v716, %v748
        %v751 = vadd.f32 %v717, %v749
        %v752 = vlaneseq
        %v753 = vshrl.u32 %v752, 7
        %v754 = vsub.s32 5, %v753
        %v755 = vrot.slane %v574, %v754
        %v756 = vlaneseq
        %v757 = vshrl.u32 %v756, 7
        %v758 = vsub.s32 5, %v757
        %v759 = vrot.slane %v575, %v758
        %v760 = vadd.f32 %v578, %v755
        %v761 = vadd.f32 %v579, %v759
        %v762 = vxor.u32 %v760, 2147483648
        %v763 = vxor.u32 %v761, 2147483648
        %v764 = vmul.f32 %v762, 1.442695
        %v765 = vpow.pop %v764
        %v766 = vmul.f32 %v763, 1.442695
        %v767 = vpow.pop %v766
        %v768 = vadd.f32 %v765, 1.0
        %v769 = vadd.f32 %v767, 1.0
        %v770 = vrcp.pop %v768
        %v771 = vmul.f32 1.0, %v770
        %v772 = vrcp.pop %v769
        %v773 = vmul.f32 1.0, %v772
        %v774 = vlaneseq
        %v775 = vshrl.u32 %v774, 7
        %v776 = vsub.s32 5, %v775
        %v777 = vrot.slane %v576, %v776
        %v778 = vlaneseq
        %v779 = vshrl.u32 %v778, 7
        %v780 = vsub.s32 5, %v779
        %v781 = vrot.slane %v577, %v780
        %v782 = vmul.f32 %v771, %v777
        %v783 = vmul.f32 %v773, %v781
        %v784 = vadd.f32 %v750, %v782
        %v785 = vadd.f32 %v751, %v783
        %v786 = vlaneseq
        %v787 = vshrl.u32 %v786, 7
        %v788 = vsub.s32 6, %v787
        %v789 = vrot.slane %v574, %v788
        %v790 = vlaneseq
        %v791 = vshrl.u32 %v790, 7
        %v792 = vsub.s32 6, %v791
        %v793 = vrot.slane %v575, %v792
        %v794 = vadd.f32 %v578, %v789
        %v795 = vadd.f32 %v579, %v793
        %v796 = vxor.u32 %v794, 2147483648
        %v797 = vxor.u32 %v795, 2147483648
        %v798 = vmul.f32 %v796, 1.442695
        %v799 = vpow.pop %v798
        %v800 = vmul.f32 %v797, 1.442695
        %v801 = vpow.pop %v800
        %v802 = vadd.f32 %v799, 1.0
        %v803 = vadd.f32 %v801, 1.0
        %v804 = vrcp.pop %v802
        %v805 = vmul.f32 1.0, %v804
        %v806 = vrcp.pop %v803
        %v807 = vmul.f32 1.0, %v806
        %v808 = vlaneseq
        %v809 = vshrl.u32 %v808, 7
        %v810 = vsub.s32 6, %v809
        %v811 = vrot.slane %v576, %v810
        %v812 = vlaneseq
        %v813 = vshrl.u32 %v812, 7
        %v814 = vsub.s32 6, %v813
        %v815 = vrot.slane %v577, %v814
        %v816 = vmul.f32 %v805, %v811
        %v817 = vmul.f32 %v807, %v815
        %v818 = vadd.f32 %v784, %v816
        %v819 = vadd.f32 %v785, %v817
        %v820 = vlaneseq
        %v821 = vshrl.u32 %v820, 7
        %v822 = vsub.s32 7, %v821
        %v823 = vrot.slane %v574, %v822
        %v824 = vlaneseq
        %v825 = vshrl.u32 %v824, 7
        %v826 = vsub.s32 7, %v825
        %v827 = vrot.slane %v575, %v826
        %v828 = vadd.f32 %v578, %v823
        %v829 = vadd.f32 %v579, %v827
        %v830 = vxor.u32 %v828, 2147483648
        %v831 = vxor.u32 %v829, 2147483648
        %v832 = vmul.f32 %v830, 1.442695
        %v833 = vpow.pop %v832
        %v834 = vmul.f32 %v831, 1.442695
        %v835 = vpow.pop %v834
        %v836 = vadd.f32 %v833, 1.0
        %v837 = vadd.f32 %v835, 1.0
        %v838 = vrcp.pop %v836
        %v839 = vmul.f32 1.0, %v838
        %v840 = vrcp.pop %v837
        %v841 = vmul.f32 1.0, %v840
        %v842 = vlaneseq
        %v843 = vshrl.u32 %v842, 7
        %v844 = vsub.s32 7, %v843
        %v845 = vrot.slane %v576, %v844
        %v846 = vlaneseq
        %v847 = vshrl.u32 %v846, 7
        %v848 = vsub.s32 7, %v847
        %v849 = vrot.slane %v577, %v848
        %v850 = vmul.f32 %v839, %v845
        %v851 = vmul.f32 %v841, %v849
        %v852 = vadd.f32 %v818, %v850
        %v853 = vadd.f32 %v819, %v851
        %854 = vst [vmem:[#allocation5] sm:$0xff] %v852
        %855 = vst [vmem:[#allocation5 + $0x8] sm:$0xff] %v853
        %v856 = vld [vmem:[#allocation5] sm:$0xff]
        %v857 = vld [vmem:[#allocation5 + $0x8] sm:$0xff]
        %v858 = vld [vmem:[%s351] sm:$0xff]
        %v859 = vld [vmem:[%s351 + $0x8] sm:$0xff]
        %861 = vset.pattern.permute.xlu0 0
        %862 = vperm.xlu0 %861, %v858
        %v863 = vpop.permute.xlu0 %862
        %866 = vset.pattern.permute.xlu0 0
        %867 = vperm.xlu0 %866, %v859
        %v868 = vpop.permute.xlu0 %867
        %v870 = vmul.f32 %v856, %v863
        %v871 = vmul.f32 %v857, %v868
        %v872 = vtanh.pop %v870
        %v873 = vtanh.pop %v871
        %874 = vst [vmem:[%s334] sm:$0xff] %v872
        %875 = vst [vmem:[%s334 + $0x8] sm:$0xff] %v873
        %s876 = sand.u32 %s193, 1
        %s877 = scalar_lea.sflag [#allocation8], %s876
        %s878 = sand.u32 %s193, 1
        %s879 = smul.addr %s878, 16
        %s880 = scalar_lea.vmem [#allocation11], %s879
        // Predicated region
        $region57: #{tpu_custom_call.1} parent=47 // pred_check
          %p881 = pneg %p203
        $region58: #{tpu_custom_call.1} parent=47 // pred_check_branch
          %883 = sbr.rel (%p881) target = $region60
        $region59: #{tpu_custom_call.1} parent=47 // pred_region
          %s884 = smul.u32 2, %s23
          %s886 = ssub.s32 256, 256
          %887 = vsyncadd %s877, %s886
          %s888 = smul.addr %s884, 128
          %s889 = scalar_lea.hbm %s7, %s888
          %s890 = sshll.u32 %s880, 4
          %s891 = int_to_ptr.vmem [resolvable:$true] %s890
          %896 = dma.vmem_to_hbm [thread:$0]  %s891, 256, %s889, %s877, 128, 128, 8
        $region60: #{tpu_custom_call.1} parent=47 // pred_fallthru
          _
      $region48: #{tpu_custom_call.1} parent=5 // pred_fallthru
        _
      %p897 = scmp.le.s32.totalorder 2, %s18
      // Predicated region
      $region61: #{tpu_custom_call.1} parent=5 // pred_check
        %p898 = pneg %p897
      $region62: #{tpu_custom_call.1} parent=5 // pred_check_branch
        %900 = sbr.rel (%p898) target = $region64
      $region63: #{tpu_custom_call.1} parent=5 // pred_region
        %s901 = ssub.s32 %s18, 2
        // Predicated region
        $region65: #{tpu_custom_call.1} parent=63 // pred_check
          %p902 = pneg %p209
        $region66: #{tpu_custom_call.1} parent=63 // pred_check_branch
          %904 = sbr.rel (%p902) target = $region68
        $region67: #{tpu_custom_call.1} parent=63 // pred_region
          %s905 = sand.u32 %s194, 1
          %s906 = scalar_lea.sflag [#allocation8], %s905
          %s907 = sand.u32 %s194, 1
          %s908 = smul.addr %s907, 16
          %s909 = scalar_lea.vmem [#allocation11], %s908
          %910 = dma.done %s906, 256
        $region68: #{tpu_custom_call.1} parent=63 // pred_fallthru
          _
      $region64: #{tpu_custom_call.1} parent=5 // pred_fallthru
        _
    $region6: #{tpu_custom_call.1} parent=1 // loop_footer
      %s22 = sadd.s32 1, %s18
    $region7: #{tpu_custom_call.1} parent=1 // loop_footer_branch
      %17 = sbr.rel target = $region3
    $region8: #{tpu_custom_call.1} parent=1 // loop_exit
      _
    %911 = vsyncpa [#allocation7], 1
    %s912 = scalar_lea.sflag [#allocation7], 1
    %913 = vsyncpa %s912, 1
    %914 = vsyncpa [#allocation10], 1
    %915 = vsyncpa [#allocation8], 1
    %s916 = scalar_lea.sflag [#allocation8], 1
    %917 = vsyncpa %s916, 1

</llo_original>
